<compile_context>
chip_gen: v5e
topology: v5e:2x2
jax: 0.10.0
libtpu: 0.0.40
codegen_flags: <defaults>
</compile_context>

<pallas_src>
import functools
import math

import numpy as np
import jax
import jax.numpy as jnp
from jax import lax
from jax.experimental import pallas as pl
from jax.experimental.pallas import tpu as pltpu


SA_SLOT = 8  # rows reserved per 7x7 tap in the spatial-attention im2col stack


@functools.lru_cache(maxsize=1)
def _roll_mode() -> str:
    """Detect pltpu.roll's rotation convention with a tiny probe kernel.

    Returns "numpy"   if  roll(x, r)[i] == x[(i - r) % N]   (jnp.roll convention)
            "inverse" if  roll(x, r)[i] == x[(i + r) % N]
            "concat"  if roll is unusable (falls back to a two-slice rotate).
    Out-of-image lanes are masked afterwards, so any fill behaviour is safe.
    """
    try:
        def _probe(x_ref, o_ref):
            o_ref[...] = pltpu.roll(x_ref[...], 1, axis=1)

        x = jnp.tile(jnp.arange(128, dtype=jnp.float32)[None, :], (8, 1))
        y = pl.pallas_call(
            _probe, out_shape=jax.ShapeDtypeStruct((8, 128), jnp.float32))(x)
        first = float(y[0, 0])
        if first == 127.0:
            return "numpy"
        if first == 1.0:
            return "inverse"
    except Exception:  # conservative fallback
        pass
    return "concat"


def _fusion_kernel(xc_ref, xt_ref, w_sa_ref, w_ca1t_ref, w_ca2m_ref,
                   w_conv_ref, b_ref, mask49_ref, mask9_ref,
                   o_ref, sa_stack_ref, cv_stack_ref, *, C, H, W, roll_mode):
    """Fused FeatureFusion forward for one batch element.

    xc_ref     : (1, C, HW) bf16   conv_x  (spatial flattened, lane-dense)
    xt_ref     : (1, C, HW) bf16   trans_x
    w_sa_ref   : (1, 49*8)  f32    7x7 spatial-attn weights, 8-padded per tap
    w_ca1t_ref : (C, Cm)    f32    channel-attn fc1 weight (transposed)
    w_ca2m_ref : (C, Cm)    f32    channel-attn fc2 weight
    w_conv_ref : (C, 9*2C)  bf16   fused conv1|conv2 3x3 weights (im2col layout)
    b_ref      : (C, 1)     f32    conv1.bias + conv2.bias
    mask49_ref : (49, HW)   f32    combined row*col validity mask per 7x7 tap
    mask9_ref  : (9, HW)    f32    combined row*col validity mask per 3x3 tap
    o_ref      : (1, C, HW) f32
    sa_stack_ref : VMEM (49*8, HW) f32   spatial-attn im2col stack
    cv_stack_ref : VMEM (9*2C, HW) bf16  conv im2col stack
    """
    HW = H * W
    f32 = jnp.float32
    bf16 = jnp.bfloat16

    def lane_shift(x, s):
        # y[:, i] = x[:, (i + s) mod HW]; out-of-image lanes are masked by caller.
        k = s % HW
        if k == 0:
            return x
        if roll_mode == "numpy":      # roll(x, r)[i] = x[(i - r) % HW]
            return pltpu.roll(x, HW - k, axis=1)
        if roll_mode == "inverse":    # roll(x, r)[i] = x[(i + r) % HW]
            return pltpu.roll(x, k, axis=1)
        return jnp.concatenate([x[:, k:], x[:, :k]], axis=1)  # safe fallback

    xc = xc_ref[0].astype(f32)                               # (C, HW)
    xt = xt_ref[0].astype(f32)                               # (C, HW)

    # ---- SpatialAttention(conv_x): sigmoid(conv7x7([mean_c; max_c])) * conv_x
    avg_c = jnp.mean(xc, axis=0, keepdims=True)              # (1, HW)
    max_c = jnp.max(xc, axis=0, keepdims=True)               # (1, HW)
    # 8-row slab: row0=avg, row1=max, rows 2..7 = 0 (keeps all stack stores
    # tile-aligned; matching weight columns are zero).
    ridx = lax.broadcasted_iota(jnp.int32, (SA_SLOT, HW), 0)
    sa8 = jnp.where(ridx == 0, jnp.broadcast_to(avg_c, (SA_SLOT, HW)),
                    jnp.where(ridx == 1, jnp.broadcast_to(max_c, (SA_SLOT, HW)),
                              jnp.zeros((SA_SLOT, HW), f32)))
    for kh in range(7):
        for kw in range(7):
            t = kh * 7 + kw
            sh = lane_shift(sa8, (kh - 3) * W + (kw - 3))
            sa_stack_ref[t * SA_SLOT:(t + 1) * SA_SLOT, :] = (
                sh * mask49_ref[t:t + 1, :])
    sa = lax.dot_general(w_sa_ref[...], sa_stack_ref[...],   # (1, HW)
                         (((1,), (0,)), ((), ())),
                         preferred_element_type=f32)
    sa_gate = pl.reciprocal(1.0 + jnp.exp(-sa), approx=True)
    conv_br = xc * sa_gate                                    # (C, HW)

    # ---- ChannelAttention(trans_x): sigmoid(fc(avgpool) + fc(maxpool)) * x
    avg_p = jnp.mean(xt, axis=1, keepdims=True)               # (C, 1)
    max_p = jnp.max(xt, axis=1, keepdims=True)                # (C, 1)
    w1t = w_ca1t_ref[...]                                     # (C, Cm)
    w2m = w_ca2m_ref[...]                                     # (C, Cm)

    def fc(p):                                                # p: (C, 1)
        h = jnp.maximum(jnp.sum(w1t * p, axis=0, keepdims=True), 0.0)  # (1, Cm)
        return jnp.sum(w2m * h, axis=1, keepdims=True)                  # (C, 1)

    ca_gate = pl.reciprocal(1.0 + jnp.exp(-(fc(avg_p) + fc(max_p))), approx=True)
    trans_br = xt * ca_gate                                   # (C, HW)

    # ---- conv1(conv_br) + conv2(trans_br): ONE im2col matmul, K = 9*2C ----
    z = jnp.concatenate([conv_br, trans_br], axis=0).astype(bf16)   # (2C, HW)
    for kh in range(3):
        for kw in range(3):
            t = kh * 3 + kw
            sh = lane_shift(z, (kh - 1) * W + (kw - 1))
            cv_stack_ref[t * 2 * C:(t + 1) * 2 * C, :] = (
                sh * mask9_ref[t:t + 1, :]).astype(bf16)
    acc = lax.dot_general(w_conv_ref[...], cv_stack_ref[...],       # (C, HW) f32
                          (((1,), (0,)), ((), ())),
                          preferred_element_type=f32)
    o_ref[0] = (acc + b_ref[...]).astype(o_ref.dtype)


@functools.partial(jax.jit, static_argnames=("roll_mode",))
def _feature_fusion_forward(conv_x, trans_x, w_sa, w_ca1t, w_ca2m, w_conv,
                            bias, mask49, mask9, *, roll_mode):
    B, C, H, W = conv_x.shape
    HW = H * W
    Cm = w_ca1t.shape[1]
    xc = conv_x.reshape(B, C, HW).astype(jnp.bfloat16)   # bf16 halves DMA
    xt = trans_x.reshape(B, C, HW).astype(jnp.bfloat16)
    kernel = functools.partial(_fusion_kernel, C=C, H=H, W=W,
                               roll_mode=roll_mode)
    out = pl.pallas_call(
        kernel,
        out_shape=jax.ShapeDtypeStruct((B, C, HW), jnp.float32),
        grid=(B,),
        in_specs=[
            pl.BlockSpec((1, C, HW), lambda b: (b, 0, 0)),
            pl.BlockSpec((1, C, HW), lambda b: (b, 0, 0)),
            pl.BlockSpec((1, 49 * SA_SLOT), lambda b: (0, 0)),
            pl.BlockSpec((C, Cm), lambda b: (0, 0)),
            pl.BlockSpec((C, Cm), lambda b: (0, 0)),
            pl.BlockSpec((C, 18 * C), lambda b: (0, 0)),
            pl.BlockSpec((C, 1), lambda b: (0, 0)),
            pl.BlockSpec((49, HW), lambda b: (0, 0)),
            pl.BlockSpec((9, HW), lambda b: (0, 0)),
        ],
        out_specs=pl.BlockSpec((1, C, HW), lambda b: (b, 0, 0)),
        scratch_shapes=[
            pltpu.VMEM((49 * SA_SLOT, HW), jnp.float32),   # 7x7 im2col stack
            pltpu.VMEM((18 * C, HW), jnp.bfloat16),        # 3x3 im2col stack
        ],
        compiler_params=pltpu.CompilerParams(
            dimension_semantics=("parallel",)),
    )(xc, xt, w_sa, w_ca1t, w_ca2m, w_conv, bias, mask49, mask9)
    return out.reshape(B, C, H, W).astype(conv_x.dtype)


class FeatureFusionPallas:
    """JAX/Pallas port of FeatureFusionModule(in_ch): SpatialAttention(7x7),
    ChannelAttention(ratio=16), conv1/conv2 3x3 (stride 1, pad 1, bias)."""

    def __init__(self, in_ch, key):
        assert in_ch >= 16 and in_ch % 16 == 0, "channel-attn needs in_ch//16 >= 1"
        cm = in_ch // 16
        k = jax.random.split(key, 7)
        u = jax.random.uniform
        # SpatialAttention: Conv2d(2, 1, 7, padding=3, bias=False)
        b_sa = 1.0 / math.sqrt(2 * 7 * 7)
        self.w_sa = u(k[0], (1, 2, 7, 7), jnp.float32, -b_sa, b_sa)
        # ChannelAttention fc: Conv2d(C, Cm, 1) -> ReLU -> Conv2d(Cm, C, 1), no bias
        b_f1 = 1.0 / math.sqrt(in_ch)
        self.w_fc1 = u(k[1], (cm, in_ch, 1, 1), jnp.float32, -b_f1, b_f1)
        b_f2 = 1.0 / math.sqrt(cm)
        self.w_fc2 = u(k[2], (in_ch, cm, 1, 1), jnp.float32, -b_f2, b_f2)
        # conv1 / conv2: Conv2d(C, C, 3, 1, 1) with bias
        b_c = 1.0 / math.sqrt(in_ch * 9)
        self.w1 = u(k[3], (in_ch, in_ch, 3, 3), jnp.float32, -b_c, b_c)
        self.b1 = u(k[4], (in_ch,), jnp.float32, -b_c, b_c)
        self.w2 = u(k[5], (in_ch, in_ch, 3, 3), jnp.float32, -b_c, b_c)
        self.b2 = u(k[6], (in_ch,), jnp.float32, -b_c, b_c)

        # ---- one-time host-side repacking into kernel-friendly layouts ----
        # 7x7 weights: per-tap 8-wide slot [w_avg, w_max, 0*6] -> (1, 49*8)
        w_tap = jnp.transpose(self.w_sa[0], (1, 2, 0)).reshape(49, 2)
        self._w_sa_flat = (jnp.zeros((49, SA_SLOT), jnp.float32)
                           .at[:, :2].set(w_tap).reshape(1, 49 * SA_SLOT))
        self._w_ca1t = jnp.transpose(self.w_fc1[:, :, 0, 0], (1, 0))   # (C, Cm)
        self._w_ca2m = self.w_fc2[:, :, 0, 0]                          # (C, Cm)
        # conv1|conv2 im2col weights: col = (kh*3+kw)*2C + j, j<C -> conv1
        w1_t = jnp.transpose(self.w1, (0, 2, 3, 1))                    # (O,3,3,I)
        w2_t = jnp.transpose(self.w2, (0, 2, 3, 1))
        self._w_conv = (jnp.concatenate([w1_t, w2_t], axis=3)
                        .reshape(in_ch, 9 * 2 * in_ch).astype(jnp.bfloat16))
        self._bias = (self.b1 + self.b2).reshape(in_ch, 1)
        self._mask_cache = {}

    def _masks(self, H, W):
        if (H, W) not in self._mask_cache:
            rows = np.repeat(np.arange(H), W)
            cols = np.tile(np.arange(W), H)

            def build(K):
                r = K // 2
                m = np.zeros((K * K, H * W), np.float32)
                for kh in range(K):
                    for kw in range(K):
                        dh, dw = kh - r, kw - r
                        m[kh * K + kw] = ((rows + dh >= 0) & (rows + dh < H) &
                                          (cols + dw >= 0) & (cols + dw < W)
                                          ).astype(np.float32)
                return jnp.asarray(m)

            self._mask_cache[(H, W)] = (build(7), build(3))
        return self._mask_cache[(H, W)]

    def __call__(self, conv_x, trans_x):
        _, _, H, W = conv_x.shape
        mask49, mask9 = self._masks(H, W)
        return _feature_fusion_forward(conv_x, trans_x, self._w_sa_flat,
                                       self._w_ca1t, self._w_ca2m, self._w_conv,
                                       self._bias, mask49, mask9,
                                       roll_mode=_roll_mode())


# --------------------------------- reference --------------------------------- #
def _reference(conv_x, trans_x, mod):
    dn = ("NCHW", "OIHW", "NCHW")
    avg = jnp.mean(conv_x, axis=1, keepdims=True)
    mx = jnp.max(conv_x, axis=1, keepdims=True)
    sa = lax.conv_general_dilated(jnp.concatenate([avg, mx], axis=1), mod.w_sa,
                                  (1, 1), [(3, 3), (3, 3)], dimension_numbers=dn)
    conv = jax.nn.sigmoid(sa) * conv_x
    w1 = mod.w_fc1[:, :, 0, 0]     # (Cm, C)
    w2 = mod.w_fc2[:, :, 0, 0]     # (C, Cm)

    def fc(p):                     # p: (B, C)
        return jnp.maximum(p @ w1.T, 0.0) @ w2.T

    avg_p = jnp.mean(trans_x, axis=(2, 3))
    max_p = jnp.max(trans_x, axis=(2, 3))
    ca = jax.nn.sigmoid(fc(avg_p) + fc(max_p))[:, :, None, None]
    trans = ca * trans_x
    y1 = lax.conv_general_dilated(conv, mod.w1, (1, 1), [(1, 1), (1, 1)],
                                  dimension_numbers=dn) + mod.b1[None, :, None, None]
    y2 = lax.conv_general_dilated(trans, mod.w2, (1, 1), [(1, 1), (1, 1)],
                                  dimension_numbers=dn) + mod.b2[None, :, None, None]
    return y1 + y2


if __name__ == "__main__":
    B, C, H, W = 2, 32, 16, 16          # in_ch=32 -> channel-attn hidden = 2
    root = jax.random.PRNGKey(0)
    k_in1, k_in2, k_par = jax.random.split(root, 3)
    conv_x = jax.random.normal(k_in1, (B, C, H, W), jnp.float32)
    trans_x = jax.random.normal(k_in2, (B, C, H, W), jnp.float32)

    mod = FeatureFusionPallas(C, key=k_par)
    out = jax.block_until_ready(mod(conv_x, trans_x))
    assert out.shape == (B, C, H, W)

    ref = _reference(conv_x, trans_x, mod)
    max_err = float(jnp.max(jnp.abs(out - ref)))
    # bf16 activations / bf16 MXU operands with f32 accumulation: a few 1e-3
    # of absolute error over the K=576 contraction is expected.
    assert jnp.allclose(out, ref, atol=3e-2, rtol=3e-2), max_err

    print("KERNEL_OK")
</pallas_src>

<mosaic_0001>
module attributes {stable_mosaic.version = 11 : i64} {
  func.func @_probe(%arg0: memref<8x128xf32, #tpu.memory_space<vmem>>, %arg1: memref<8x128xf32, #tpu.memory_space<vmem>>) attributes {dimension_semantics = [], scalar_prefetch = 0 : i64, scratch_operands = 0 : i64, tpu.core_type = #tpu.core_type<tc>} {
    %c0 = arith.constant 0 : index
    %c0_0 = arith.constant 0 : index
    %0 = vector.load %arg0[%c0, %c0_0] : memref<8x128xf32, #tpu.memory_space<vmem>>, vector<8x128xf32>
    %c1_i32 = arith.constant 1 : i32
    %1 = tpu.dynamic_rotate %0 by %c1_i32 dim 1 : vector<8x128xf32>, i32 -> vector<8x128xf32>
    %c0_1 = arith.constant 0 : index
    %c0_2 = arith.constant 0 : index
    %2 = vector.load %arg1[%c0_1, %c0_2] : memref<8x128xf32, #tpu.memory_space<vmem>>, vector<8x128xf32>
    tpu.vector_store %arg1[%c0_1, %c0_2], %1 {strides = array<i32>} : memref<8x128xf32, #tpu.memory_space<vmem>>, vector<8x128xf32>,
    return
  }
}

module attributes {stable_mosaic.version = 11 : i64} {
  func.func @_fusion_kernel(%arg0: i32, %arg1: memref<1x32x256xbf16, #tpu.memory_space<vmem>>, %arg2: memref<1x32x256xbf16, #tpu.memory_space<vmem>>, %arg3: memref<1x392xf32, #tpu.memory_space<vmem>>, %arg4: memref<32x2xf32, #tpu.memory_space<vmem>>, %arg5: memref<32x2xf32, #tpu.memory_space<vmem>>, %arg6: memref<32x576xbf16, #tpu.memory_space<vmem>>, %arg7: memref<32x1xf32, #tpu.memory_space<vmem>>, %arg8: memref<49x256xf32, #tpu.memory_space<vmem>>, %arg9: memref<9x256xf32, #tpu.memory_space<vmem>>, %arg10: memref<1x32x256xf32, #tpu.memory_space<vmem>>, %arg11: memref<392x256xf32, #tpu.memory_space<vmem>>, %arg12: memref<576x256xbf16, #tpu.memory_space<vmem>>) attributes {dimension_semantics = [#tpu.dimension_semantics<parallel>], iteration_bounds = array<i64: 2>, scalar_prefetch = 0 : i64, scratch_operands = 2 : i64, tpu.core_type = #tpu.core_type<tc>, window_params = [{transform_indices = @transform_0, window_bounds = array<i64: 1, 32, 256>}, {transform_indices = @transform_1, window_bounds = array<i64: 1, 32, 256>}, {pipeline_mode = #tpu.pipeline_mode<synchronous>, transform_indices = @transform_2, window_bounds = array<i64: 1, 392>}, {pipeline_mode = #tpu.pipeline_mode<synchronous>, transform_indices = @transform_3, window_bounds = array<i64: 32, 2>}, {pipeline_mode = #tpu.pipeline_mode<synchronous>, transform_indices = @transform_4, window_bounds = array<i64: 32, 2>}, {pipeline_mode = #tpu.pipeline_mode<synchronous>, transform_indices = @transform_5, window_bounds = array<i64: 32, 576>}, {pipeline_mode = #tpu.pipeline_mode<synchronous>, transform_indices = @transform_6, window_bounds = array<i64: 32, 1>}, {pipeline_mode = #tpu.pipeline_mode<synchronous>, transform_indices = @transform_7, window_bounds = array<i64: 49, 256>}, {pipeline_mode = #tpu.pipeline_mode<synchronous>, transform_indices = @transform_8, window_bounds = array<i64: 9, 256>}, {transform_indices = @transform_9, window_bounds = array<i64: 1, 32, 256>}]} {
    %c0 = arith.constant 0 : index
    %c0_0 = arith.constant 0 : index
    %c0_1 = arith.constant 0 : index
    %0 = vector.load %arg1[%c0, %c0_0, %c0_1] : memref<1x32x256xbf16, #tpu.memory_space<vmem>>, vector<1x32x256xbf16>
    %1 = vector.shape_cast %0 : vector<1x32x256xbf16> to vector<32x256xbf16>
    %2 = arith.extf %1 : vector<32x256xbf16> to vector<32x256xf32>
    %c0_2 = arith.constant 0 : index
    %c0_3 = arith.constant 0 : index
    %c0_4 = arith.constant 0 : index
    %3 = vector.load %arg2[%c0_2, %c0_3, %c0_4] : memref<1x32x256xbf16, #tpu.memory_space<vmem>>, vector<1x32x256xbf16>
    %4 = vector.shape_cast %3 : vector<1x32x256xbf16> to vector<32x256xbf16>
    %5 = arith.extf %4 : vector<32x256xbf16> to vector<32x256xf32>
    %cst = arith.constant dense<0.000000e+00> : vector<256xf32>
    %6 = vector.multi_reduction <add>, %2, %cst [0] : vector<32x256xf32> to vector<256xf32>
    %7 = vector.shape_cast %6 : vector<256xf32> to vector<1x256xf32>
    %cst_5 = arith.constant 3.200000e+01 : f32
    %8 = vector.broadcast %cst_5 : f32 to vector<1x256xf32>
    %9 = arith.divf %7, %8 : vector<1x256xf32>
    %cst_6 = arith.constant dense<0xFF800000> : vector<256xf32>
    %10 = vector.multi_reduction <maximumf>, %2, %cst_6 [0] : vector<32x256xf32> to vector<256xf32>
    %11 = vector.shape_cast %10 : vector<256xf32> to vector<1x256xf32>
    %12 = tpu.iota {dimensions = array<i32: 0>} : vector<8x256xi32>
    %c0_i32 = arith.constant 0 : i32
    %13 = vector.broadcast %c0_i32 : i32 to vector<8x256xi32>
    %14 = arith.cmpi eq, %12, %13 : vector<8x256xi32>
    %15 = vector.shape_cast %9 : vector<1x256xf32> to vector<1x256xf32>
    %16 = vector.broadcast %15 : vector<1x256xf32> to vector<8x256xf32>
    %c1_i32 = arith.constant 1 : i32
    %17 = vector.broadcast %c1_i32 : i32 to vector<8x256xi32>
    %18 = arith.cmpi eq, %12, %17 : vector<8x256xi32>
    %19 = vector.shape_cast %11 : vector<1x256xf32> to vector<1x256xf32>
    %20 = vector.broadcast %19 : vector<1x256xf32> to vector<8x256xf32>
    %cst_7 = arith.constant 0.000000e+00 : f32
    %21 = vector.broadcast %cst_7 : f32 to vector<8x256xf32>
    %22 = arith.select %18, %20, %21 : vector<8x256xi1>, vector<8x256xf32>
    %23 = arith.select %14, %16, %22 : vector<8x256xi1>, vector<8x256xf32>
    %24 = vector.extract_strided_slice %23 {offsets = [0, 205], sizes = [8, 51], strides = [1, 1]} : vector<8x256xf32> to vector<8x51xf32>
    %25 = vector.extract_strided_slice %23 {offsets = [0, 0], sizes = [8, 205], strides = [1, 1]} : vector<8x256xf32> to vector<8x205xf32>
    %26 = tpu.concatenate %24, %25 in 1 : vector<8x51xf32>, vector<8x205xf32> -> vector<8x256xf32>
    %c0_8 = arith.constant 0 : index
    %c0_9 = arith.constant 0 : index
    %27 = vector.load %arg8[%c0_8, %c0_9] : memref<49x256xf32, #tpu.memory_space<vmem>>, vector<1x256xf32>
    %28 = vector.broadcast %27 : vector<1x256xf32> to vector<8x256xf32>
    %29 = arith.mulf %26, %28 : vector<8x256xf32>
    %c0_10 = arith.constant 0 : index
    %c0_11 = arith.constant 0 : index
    %30 = vector.load %arg11[%c0_10, %c0_11] : memref<392x256xf32, #tpu.memory_space<vmem>>, vector<8x256xf32>
    tpu.vector_store %arg11[%c0_10, %c0_11], %29 {strides = array<i32>} : memref<392x256xf32, #tpu.memory_space<vmem>>, vector<8x256xf32>,
    %31 = vector.extract_strided_slice %23 {offsets = [0, 206], sizes = [8, 50], strides = [1, 1]} : vector<8x256xf32> to vector<8x50xf32>
    %32 = vector.extract_strided_slice %23 {offsets = [0, 0], sizes = [8, 206], strides = [1, 1]} : vector<8x256xf32> to vector<8x206xf32>
    %33 = tpu.concatenate %31, %32 in 1 : vector<8x50xf32>, vector<8x206xf32> -> vector<8x256xf32>
    %c1 = arith.constant 1 : index
    %c0_12 = arith.constant 0 : index
    %34 = vector.load %arg8[%c1, %c0_12] : memref<49x256xf32, #tpu.memory_space<vmem>>, vector<1x256xf32>
    %35 = vector.broadcast %34 : vector<1x256xf32> to vector<8x256xf32>
    %36 = arith.mulf %33, %35 : vector<8x256xf32>
    %c8 = arith.constant 8 : index
    %c0_13 = arith.constant 0 : index
    %37 = vector.load %arg11[%c8, %c0_13] : memref<392x256xf32, #tpu.memory_space<vmem>>, vector<8x256xf32>
    tpu.vector_store %arg11[%c8, %c0_13], %36 {strides = array<i32>} : memref<392x256xf32, #tpu.memory_space<vmem>>, vector<8x256xf32>,
    %38 = vector.extract_strided_slice %23 {offsets = [0, 207], sizes = [8, 49], strides = [1, 1]} : vector<8x256xf32> to vector<8x49xf32>
    %39 = vector.extract_strided_slice %23 {offsets = [0, 0], sizes = [8, 207], strides = [1, 1]} : vector<8x256xf32> to vector<8x207xf32>
    %40 = tpu.concatenate %38, %39 in 1 : vector<8x49xf32>, vector<8x207xf32> -> vector<8x256xf32>
    %c2 = arith.constant 2 : index
    %c0_14 = arith.constant 0 : index
    %41 = vector.load %arg8[%c2, %c0_14] : memref<49x256xf32, #tpu.memory_space<vmem>>, vector<1x256xf32>
    %42 = vector.broadcast %41 : vector<1x256xf32> to vector<8x256xf32>
    %43 = arith.mulf %40, %42 : vector<8x256xf32>
    %c16 = arith.constant 16 : index
    %c0_15 = arith.constant 0 : index
    %44 = vector.load %arg11[%c16, %c0_15] : memref<392x256xf32, #tpu.memory_space<vmem>>, vector<8x256xf32>
    tpu.vector_store %arg11[%c16, %c0_15], %43 {strides = array<i32>} : memref<392x256xf32, #tpu.memory_space<vmem>>, vector<8x256xf32>,
    %45 = vector.extract_strided_slice %23 {offsets = [0, 208], sizes = [8, 48], strides = [1, 1]} : vector<8x256xf32> to vector<8x48xf32>
    %46 = vector.extract_strided_slice %23 {offsets = [0, 0], sizes = [8, 208], strides = [1, 1]} : vector<8x256xf32> to vector<8x208xf32>
    %47 = tpu.concatenate %45, %46 in 1 : vector<8x48xf32>, vector<8x208xf32> -> vector<8x256xf32>
    %c3 = arith.constant 3 : index
    %c0_16 = arith.constant 0 : index
    %48 = vector.load %arg8[%c3, %c0_16] : memref<49x256xf32, #tpu.memory_space<vmem>>, vector<1x256xf32>
    %49 = vector.broadcast %48 : vector<1x256xf32> to vector<8x256xf32>
    %50 = arith.mulf %47, %49 : vector<8x256xf32>
    %c24 = arith.constant 24 : index
    %c0_17 = arith.constant 0 : index
    %51 = vector.load %arg11[%c24, %c0_17] : memref<392x256xf32, #tpu.memory_space<vmem>>, vector<8x256xf32>
    tpu.vector_store %arg11[%c24, %c0_17], %50 {strides = array<i32>} : memref<392x256xf32, #tpu.memory_space<vmem>>, vector<8x256xf32>,
    %52 = vector.extract_strided_slice %23 {offsets = [0, 209], sizes = [8, 47], strides = [1, 1]} : vector<8x256xf32> to vector<8x47xf32>
    %53 = vector.extract_strided_slice %23 {offsets = [0, 0], sizes = [8, 209], strides = [1, 1]} : vector<8x256xf32> to vector<8x209xf32>
    %54 = tpu.concatenate %52, %53 in 1 : vector<8x47xf32>, vector<8x209xf32> -> vector<8x256xf32>
    %c4 = arith.constant 4 : index
    %c0_18 = arith.constant 0 : index
    %55 = vector.load %arg8[%c4, %c0_18] : memref<49x256xf32, #tpu.memory_space<vmem>>, vector<1x256xf32>
    %56 = vector.broadcast %55 : vector<1x256xf32> to vector<8x256xf32>
    %57 = arith.mulf %54, %56 : vector<8x256xf32>
    %c32 = arith.constant 32 : index
    %c0_19 = arith.constant 0 : index
    %58 = vector.load %arg11[%c32, %c0_19] : memref<392x256xf32, #tpu.memory_space<vmem>>, vector<8x256xf32>
    tpu.vector_store %arg11[%c32, %c0_19], %57 {strides = array<i32>} : memref<392x256xf32, #tpu.memory_space<vmem>>, vector<8x256xf32>,
    %59 = vector.extract_strided_slice %23 {offsets = [0, 210], sizes = [8, 46], strides = [1, 1]} : vector<8x256xf32> to vector<8x46xf32>
    %60 = vector.extract_strided_slice %23 {offsets = [0, 0], sizes = [8, 210], strides = [1, 1]} : vector<8x256xf32> to vector<8x210xf32>
    %61 = tpu.concatenate %59, %60 in 1 : vector<8x46xf32>, vector<8x210xf32> -> vector<8x256xf32>
    %c5 = arith.constant 5 : index
    %c0_20 = arith.constant 0 : index
    %62 = vector.load %arg8[%c5, %c0_20] : memref<49x256xf32, #tpu.memory_space<vmem>>, vector<1x256xf32>
    %63 = vector.broadcast %62 : vector<1x256xf32> to vector<8x256xf32>
    %64 = arith.mulf %61, %63 : vector<8x256xf32>
    %c40 = arith.constant 40 : index
    %c0_21 = arith.constant 0 : index
    %65 = vector.load %arg11[%c40, %c0_21] : memref<392x256xf32, #tpu.memory_space<vmem>>, vector<8x256xf32>
    tpu.vector_store %arg11[%c40, %c0_21], %64 {strides = array<i32>} : memref<392x256xf32, #tpu.memory_space<vmem>>, vector<8x256xf32>,
    %66 = vector.extract_strided_slice %23 {offsets = [0, 211], sizes = [8, 45], strides = [1, 1]} : vector<8x256xf32> to vector<8x45xf32>
    %67 = vector.extract_strided_slice %23 {offsets = [0, 0], sizes = [8, 211], strides = [1, 1]} : vector<8x256xf32> to vector<8x211xf32>
    %68 = tpu.concatenate %66, %67 in 1 : vector<8x45xf32>, vector<8x211xf32> -> vector<8x256xf32>
    %c6 = arith.constant 6 : index
    %c0_22 = arith.constant 0 : index
    %69 = vector.load %arg8[%c6, %c0_22] : memref<49x256xf32, #tpu.memory_space<vmem>>, vector<1x256xf32>
    %70 = vector.broadcast %69 : vector<1x256xf32> to vector<8x256xf32>
    %71 = arith.mulf %68, %70 : vector<8x256xf32>
    %c48 = arith.constant 48 : index
    %c0_23 = arith.constant 0 : index
    %72 = vector.load %arg11[%c48, %c0_23] : memref<392x256xf32, #tpu.memory_space<vmem>>, vector<8x256xf32>
    tpu.vector_store %arg11[%c48, %c0_23], %71 {strides = array<i32>} : memref<392x256xf32, #tpu.memory_space<vmem>>, vector<8x256xf32>,
    %73 = vector.extract_strided_slice %23 {offsets = [0, 221], sizes = [8, 35], strides = [1, 1]} : vector<8x256xf32> to vector<8x35xf32>
    %74 = vector.extract_strided_slice %23 {offsets = [0, 0], sizes = [8, 221], strides = [1, 1]} : vector<8x256xf32> to vector<8x221xf32>
    %75 = tpu.concatenate %73, %74 in 1 : vector<8x35xf32>, vector<8x221xf32> -> vector<8x256xf32>
    %c7 = arith.constant 7 : index
    %c0_24 = arith.constant 0 : index
    %76 = vector.load %arg8[%c7, %c0_24] : memref<49x256xf32, #tpu.memory_space<vmem>>, vector<1x256xf32>
    %77 = vector.broadcast %76 : vector<1x256xf32> to vector<8x256xf32>
    %78 = arith.mulf %75, %77 : vector<8x256xf32>
    %c56 = arith.constant 56 : index
    %c0_25 = arith.constant 0 : index
    %79 = vector.load %arg11[%c56, %c0_25] : memref<392x256xf32, #tpu.memory_space<vmem>>, vector<8x256xf32>
    tpu.vector_store %arg11[%c56, %c0_25], %78 {strides = array<i32>} : memref<392x256xf32, #tpu.memory_space<vmem>>, vector<8x256xf32>,
    %80 = vector.extract_strided_slice %23 {offsets = [0, 222], sizes = [8, 34], strides = [1, 1]} : vector<8x256xf32> to vector<8x34xf32>
    %81 = vector.extract_strided_slice %23 {offsets = [0, 0], sizes = [8, 222], strides = [1, 1]} : vector<8x256xf32> to vector<8x222xf32>
    %82 = tpu.concatenate %80, %81 in 1 : vector<8x34xf32>, vector<8x222xf32> -> vector<8x256xf32>
    %c8_26 = arith.constant 8 : index
    %c0_27 = arith.constant 0 : index
    %83 = vector.load %arg8[%c8_26, %c0_27] : memref<49x256xf32, #tpu.memory_space<vmem>>, vector<1x256xf32>
    %84 = vector.broadcast %83 : vector<1x256xf32> to vector<8x256xf32>
    %85 = arith.mulf %82, %84 : vector<8x256xf32>
    %c64 = arith.constant 64 : index
    %c0_28 = arith.constant 0 : index
    %86 = vector.load %arg11[%c64, %c0_28] : memref<392x256xf32, #tpu.memory_space<vmem>>, vector<8x256xf32>
    tpu.vector_store %arg11[%c64, %c0_28], %85 {strides = array<i32>} : memref<392x256xf32, #tpu.memory_space<vmem>>, vector<8x256xf32>,
    %87 = vector.extract_strided_slice %23 {offsets = [0, 223], sizes = [8, 33], strides = [1, 1]} : vector<8x256xf32> to vector<8x33xf32>
    %88 = vector.extract_strided_slice %23 {offsets = [0, 0], sizes = [8, 223], strides = [1, 1]} : vector<8x256xf32> to vector<8x223xf32>
    %89 = tpu.concatenate %87, %88 in 1 : vector<8x33xf32>, vector<8x223xf32> -> vector<8x256xf32>
    %c9 = arith.constant 9 : index
    %c0_29 = arith.constant 0 : index
    %90 = vector.load %arg8[%c9, %c0_29] : memref<49x256xf32, #tpu.memory_space<vmem>>, vector<1x256xf32>
    %91 = vector.broadcast %90 : vector<1x256xf32> to vector<8x256xf32>
    %92 = arith.mulf %89, %91 : vector<8x256xf32>
    %c72 = arith.constant 72 : index
    %c0_30 = arith.constant 0 : index
    %93 = vector.load %arg11[%c72, %c0_30] : memref<392x256xf32, #tpu.memory_space<vmem>>, vector<8x256xf32>
    tpu.vector_store %arg11[%c72, %c0_30], %92 {strides = array<i32>} : memref<392x256xf32, #tpu.memory_space<vmem>>, vector<8x256xf32>,
    %94 = vector.extract_strided_slice %23 {offsets = [0, 224], sizes = [8, 32], strides = [1, 1]} : vector<8x256xf32> to vector<8x32xf32>
    %95 = vector.extract_strided_slice %23 {offsets = [0, 0], sizes = [8, 224], strides = [1, 1]} : vector<8x256xf32> to vector<8x224xf32>
    %96 = tpu.concatenate %94, %95 in 1 : vector<8x32xf32>, vector<8x224xf32> -> vector<8x256xf32>
    %c10 = arith.constant 10 : index
    %c0_31 = arith.constant 0 : index
    %97 = vector.load %arg8[%c10, %c0_31] : memref<49x256xf32, #tpu.memory_space<vmem>>, vector<1x256xf32>
    %98 = vector.broadcast %97 : vector<1x256xf32> to vector<8x256xf32>
    %99 = arith.mulf %96, %98 : vector<8x256xf32>
    %c80 = arith.constant 80 : index
    %c0_32 = arith.constant 0 : index
    %100 = vector.load %arg11[%c80, %c0_32] : memref<392x256xf32, #tpu.memory_space<vmem>>, vector<8x256xf32>
    tpu.vector_store %arg11[%c80, %c0_32], %99 {strides = array<i32>} : memref<392x256xf32, #tpu.memory_space<vmem>>, vector<8x256xf32>,
    %101 = vector.extract_strided_slice %23 {offsets = [0, 225], sizes = [8, 31], strides = [1, 1]} : vector<8x256xf32> to vector<8x31xf32>
    %102 = vector.extract_strided_slice %23 {offsets = [0, 0], sizes = [8, 225], strides = [1, 1]} : vector<8x256xf32> to vector<8x225xf32>
    %103 = tpu.concatenate %101, %102 in 1 : vector<8x31xf32>, vector<8x225xf32> -> vector<8x256xf32>
    %c11 = arith.constant 11 : index
    %c0_33 = arith.constant 0 : index
    %104 = vector.load %arg8[%c11, %c0_33] : memref<49x256xf32, #tpu.memory_space<vmem>>, vector<1x256xf32>
    %105 = vector.broadcast %104 : vector<1x256xf32> to vector<8x256xf32>
    %106 = arith.mulf %103, %105 : vector<8x256xf32>
    %c88 = arith.constant 88 : index
    %c0_34 = arith.constant 0 : index
    %107 = vector.load %arg11[%c88, %c0_34] : memref<392x256xf32, #tpu.memory_space<vmem>>, vector<8x256xf32>
    tpu.vector_store %arg11[%c88, %c0_34], %106 {strides = array<i32>} : memref<392x256xf32, #tpu.memory_space<vmem>>, vector<8x256xf32>,
    %108 = vector.extract_strided_slice %23 {offsets = [0, 226], sizes = [8, 30], strides = [1, 1]} : vector<8x256xf32> to vector<8x30xf32>
    %109 = vector.extract_strided_slice %23 {offsets = [0, 0], sizes = [8, 226], strides = [1, 1]} : vector<8x256xf32> to vector<8x226xf32>
    %110 = tpu.concatenate %108, %109 in 1 : vector<8x30xf32>, vector<8x226xf32> -> vector<8x256xf32>
    %c12 = arith.constant 12 : index
    %c0_35 = arith.constant 0 : index
    %111 = vector.load %arg8[%c12, %c0_35] : memref<49x256xf32, #tpu.memory_space<vmem>>, vector<1x256xf32>
    %112 = vector.broadcast %111 : vector<1x256xf32> to vector<8x256xf32>
    %113 = arith.mulf %110, %112 : vector<8x256xf32>
    %c96 = arith.constant 96 : index
    %c0_36 = arith.constant 0 : index
    %114 = vector.load %arg11[%c96, %c0_36] : memref<392x256xf32, #tpu.memory_space<vmem>>, vector<8x256xf32>
    tpu.vector_store %arg11[%c96, %c0_36], %113 {strides = array<i32>} : memref<392x256xf32, #tpu.memory_space<vmem>>, vector<8x256xf32>,
    %115 = vector.extract_strided_slice %23 {offsets = [0, 227], sizes = [8, 29], strides = [1, 1]} : vector<8x256xf32> to vector<8x29xf32>
    %116 = vector.extract_strided_slice %23 {offsets = [0, 0], sizes = [8, 227], strides = [1, 1]} : vector<8x256xf32> to vector<8x227xf32>
    %117 = tpu.concatenate %115, %116 in 1 : vector<8x29xf32>, vector<8x227xf32> -> vector<8x256xf32>
    %c13 = arith.constant 13 : index
    %c0_37 = arith.constant 0 : index
    %118 = vector.load %arg8[%c13, %c0_37] : memref<49x256xf32, #tpu.memory_space<vmem>>, vector<1x256xf32>
    %119 = vector.broadcast %118 : vector<1x256xf32> to vector<8x256xf32>
    %120 = arith.mulf %117, %119 : vector<8x256xf32>
    %c104 = arith.constant 104 : index
    %c0_38 = arith.constant 0 : index
    %121 = vector.load %arg11[%c104, %c0_38] : memref<392x256xf32, #tpu.memory_space<vmem>>, vector<8x256xf32>
    tpu.vector_store %arg11[%c104, %c0_38], %120 {strides = array<i32>} : memref<392x256xf32, #tpu.memory_space<vmem>>, vector<8x256xf32>,
    %122 = vector.extract_strided_slice %23 {offsets = [0, 237], sizes = [8, 19], strides = [1, 1]} : vector<8x256xf32> to vector<8x19xf32>
    %123 = vector.extract_strided_slice %23 {offsets = [0, 0], sizes = [8, 237], strides = [1, 1]} : vector<8x256xf32> to vector<8x237xf32>
    %124 = tpu.concatenate %122, %123 in 1 : vector<8x19xf32>, vector<8x237xf32> -> vector<8x256xf32>
    %c14 = arith.constant 14 : index
    %c0_39 = arith.constant 0 : index
    %125 = vector.load %arg8[%c14, %c0_39] : memref<49x256xf32, #tpu.memory_space<vmem>>, vector<1x256xf32>
    %126 = vector.broadcast %125 : vector<1x256xf32> to vector<8x256xf32>
    %127 = arith.mulf %124, %126 : vector<8x256xf32>
    %c112 = arith.constant 112 : index
    %c0_40 = arith.constant 0 : index
    %128 = vector.load %arg11[%c112, %c0_40] : memref<392x256xf32, #tpu.memory_space<vmem>>, vector<8x256xf32>
    tpu.vector_store %arg11[%c112, %c0_40], %127 {strides = array<i32>} : memref<392x256xf32, #tpu.memory_space<vmem>>, vector<8x256xf32>,
    %129 = vector.extract_strided_slice %23 {offsets = [0, 238], sizes = [8, 18], strides = [1, 1]} : vector<8x256xf32> to vector<8x18xf32>
    %130 = vector.extract_strided_slice %23 {offsets = [0, 0], sizes = [8, 238], strides = [1, 1]} : vector<8x256xf32> to vector<8x238xf32>
    %131 = tpu.concatenate %129, %130 in 1 : vector<8x18xf32>, vector<8x238xf32> -> vector<8x256xf32>
    %c15 = arith.constant 15 : index
    %c0_41 = arith.constant 0 : index
    %132 = vector.load %arg8[%c15, %c0_41] : memref<49x256xf32, #tpu.memory_space<vmem>>, vector<1x256xf32>
    %133 = vector.broadcast %132 : vector<1x256xf32> to vector<8x256xf32>
    %134 = arith.mulf %131, %133 : vector<8x256xf32>
    %c120 = arith.constant 120 : index
    %c0_42 = arith.constant 0 : index
    %135 = vector.load %arg11[%c120, %c0_42] : memref<392x256xf32, #tpu.memory_space<vmem>>, vector<8x256xf32>
    tpu.vector_store %arg11[%c120, %c0_42], %134 {strides = array<i32>} : memref<392x256xf32, #tpu.memory_space<vmem>>, vector<8x256xf32>,
    %136 = vector.extract_strided_slice %23 {offsets = [0, 239], sizes = [8, 17], strides = [1, 1]} : vector<8x256xf32> to vector<8x17xf32>
    %137 = vector.extract_strided_slice %23 {offsets = [0, 0], sizes = [8, 239], strides = [1, 1]} : vector<8x256xf32> to vector<8x239xf32>
    %138 = tpu.concatenate %136, %137 in 1 : vector<8x17xf32>, vector<8x239xf32> -> vector<8x256xf32>
    %c16_43 = arith.constant 16 : index
    %c0_44 = arith.constant 0 : index
    %139 = vector.load %arg8[%c16_43, %c0_44] : memref<49x256xf32, #tpu.memory_space<vmem>>, vector<1x256xf32>
    %140 = vector.broadcast %139 : vector<1x256xf32> to vector<8x256xf32>
    %141 = arith.mulf %138, %140 : vector<8x256xf32>
    %c128 = arith.constant 128 : index
    %c0_45 = arith.constant 0 : index
    %142 = vector.load %arg11[%c128, %c0_45] : memref<392x256xf32, #tpu.memory_space<vmem>>, vector<8x256xf32>
    tpu.vector_store %arg11[%c128, %c0_45], %141 {strides = array<i32>} : memref<392x256xf32, #tpu.memory_space<vmem>>, vector<8x256xf32>,
    %143 = vector.extract_strided_slice %23 {offsets = [0, 240], sizes = [8, 16], strides = [1, 1]} : vector<8x256xf32> to vector<8x16xf32>
    %144 = vector.extract_strided_slice %23 {offsets = [0, 0], sizes = [8, 240], strides = [1, 1]} : vector<8x256xf32> to vector<8x240xf32>
    %145 = tpu.concatenate %143, %144 in 1 : vector<8x16xf32>, vector<8x240xf32> -> vector<8x256xf32>
    %c17 = arith.constant 17 : index
    %c0_46 = arith.constant 0 : index
    %146 = vector.load %arg8[%c17, %c0_46] : memref<49x256xf32, #tpu.memory_space<vmem>>, vector<1x256xf32>
    %147 = vector.broadcast %146 : vector<1x256xf32> to vector<8x256xf32>
    %148 = arith.mulf %145, %147 : vector<8x256xf32>
    %c136 = arith.constant 136 : index
    %c0_47 = arith.constant 0 : index
    %149 = vector.load %arg11[%c136, %c0_47] : memref<392x256xf32, #tpu.memory_space<vmem>>, vector<8x256xf32>
    tpu.vector_store %arg11[%c136, %c0_47], %148 {strides = array<i32>} : memref<392x256xf32, #tpu.memory_space<vmem>>, vector<8x256xf32>,
    %150 = vector.extract_strided_slice %23 {offsets = [0, 241], sizes = [8, 15], strides = [1, 1]} : vector<8x256xf32> to vector<8x15xf32>
    %151 = vector.extract_strided_slice %23 {offsets = [0, 0], sizes = [8, 241], strides = [1, 1]} : vector<8x256xf32> to vector<8x241xf32>
    %152 = tpu.concatenate %150, %151 in 1 : vector<8x15xf32>, vector<8x241xf32> -> vector<8x256xf32>
    %c18 = arith.constant 18 : index
    %c0_48 = arith.constant 0 : index
    %153 = vector.load %arg8[%c18, %c0_48] : memref<49x256xf32, #tpu.memory_space<vmem>>, vector<1x256xf32>
    %154 = vector.broadcast %153 : vector<1x256xf32> to vector<8x256xf32>
    %155 = arith.mulf %152, %154 : vector<8x256xf32>
    %c144 = arith.constant 144 : index
    %c0_49 = arith.constant 0 : index
    %156 = vector.load %arg11[%c144, %c0_49] : memref<392x256xf32, #tpu.memory_space<vmem>>, vector<8x256xf32>
    tpu.vector_store %arg11[%c144, %c0_49], %155 {strides = array<i32>} : memref<392x256xf32, #tpu.memory_space<vmem>>, vector<8x256xf32>,
    %157 = vector.extract_strided_slice %23 {offsets = [0, 242], sizes = [8, 14], strides = [1, 1]} : vector<8x256xf32> to vector<8x14xf32>
    %158 = vector.extract_strided_slice %23 {offsets = [0, 0], sizes = [8, 242], strides = [1, 1]} : vector<8x256xf32> to vector<8x242xf32>
    %159 = tpu.concatenate %157, %158 in 1 : vector<8x14xf32>, vector<8x242xf32> -> vector<8x256xf32>
    %c19 = arith.constant 19 : index
    %c0_50 = arith.constant 0 : index
    %160 = vector.load %arg8[%c19, %c0_50] : memref<49x256xf32, #tpu.memory_space<vmem>>, vector<1x256xf32>
    %161 = vector.broadcast %160 : vector<1x256xf32> to vector<8x256xf32>
    %162 = arith.mulf %159, %161 : vector<8x256xf32>
    %c152 = arith.constant 152 : index
    %c0_51 = arith.constant 0 : index
    %163 = vector.load %arg11[%c152, %c0_51] : memref<392x256xf32, #tpu.memory_space<vmem>>, vector<8x256xf32>
    tpu.vector_store %arg11[%c152, %c0_51], %162 {strides = array<i32>} : memref<392x256xf32, #tpu.memory_space<vmem>>, vector<8x256xf32>,
    %164 = vector.extract_strided_slice %23 {offsets = [0, 243], sizes = [8, 13], strides = [1, 1]} : vector<8x256xf32> to vector<8x13xf32>
    %165 = vector.extract_strided_slice %23 {offsets = [0, 0], sizes = [8, 243], strides = [1, 1]} : vector<8x256xf32> to vector<8x243xf32>
    %166 = tpu.concatenate %164, %165 in 1 : vector<8x13xf32>, vector<8x243xf32> -> vector<8x256xf32>
    %c20 = arith.constant 20 : index
    %c0_52 = arith.constant 0 : index
    %167 = vector.load %arg8[%c20, %c0_52] : memref<49x256xf32, #tpu.memory_space<vmem>>, vector<1x256xf32>
    %168 = vector.broadcast %167 : vector<1x256xf32> to vector<8x256xf32>
    %169 = arith.mulf %166, %168 : vector<8x256xf32>
    %c160 = arith.constant 160 : index
    %c0_53 = arith.constant 0 : index
    %170 = vector.load %arg11[%c160, %c0_53] : memref<392x256xf32, #tpu.memory_space<vmem>>, vector<8x256xf32>
    tpu.vector_store %arg11[%c160, %c0_53], %169 {strides = array<i32>} : memref<392x256xf32, #tpu.memory_space<vmem>>, vector<8x256xf32>,
    %171 = vector.extract_strided_slice %23 {offsets = [0, 253], sizes = [8, 3], strides = [1, 1]} : vector<8x256xf32> to vector<8x3xf32>
    %172 = vector.extract_strided_slice %23 {offsets = [0, 0], sizes = [8, 253], strides = [1, 1]} : vector<8x256xf32> to vector<8x253xf32>
    %173 = tpu.concatenate %171, %172 in 1 : vector<8x3xf32>, vector<8x253xf32> -> vector<8x256xf32>
    %c21 = arith.constant 21 : index
    %c0_54 = arith.constant 0 : index
    %174 = vector.load %arg8[%c21, %c0_54] : memref<49x256xf32, #tpu.memory_space<vmem>>, vector<1x256xf32>
    %175 = vector.broadcast %174 : vector<1x256xf32> to vector<8x256xf32>
    %176 = arith.mulf %173, %175 : vector<8x256xf32>
    %c168 = arith.constant 168 : index
    %c0_55 = arith.constant 0 : index
    %177 = vector.load %arg11[%c168, %c0_55] : memref<392x256xf32, #tpu.memory_space<vmem>>, vector<8x256xf32>
    tpu.vector_store %arg11[%c168, %c0_55], %176 {strides = array<i32>} : memref<392x256xf32, #tpu.memory_space<vmem>>, vector<8x256xf32>,
    %178 = vector.extract_strided_slice %23 {offsets = [0, 254], sizes = [8, 2], strides = [1, 1]} : vector<8x256xf32> to vector<8x2xf32>
    %179 = vector.extract_strided_slice %23 {offsets = [0, 0], sizes = [8, 254], strides = [1, 1]} : vector<8x256xf32> to vector<8x254xf32>
    %180 = tpu.concatenate %178, %179 in 1 : vector<8x2xf32>, vector<8x254xf32> -> vector<8x256xf32>
    %c22 = arith.constant 22 : index
    %c0_56 = arith.constant 0 : index
    %181 = vector.load %arg8[%c22, %c0_56] : memref<49x256xf32, #tpu.memory_space<vmem>>, vector<1x256xf32>
    %182 = vector.broadcast %181 : vector<1x256xf32> to vector<8x256xf32>
    %183 = arith.mulf %180, %182 : vector<8x256xf32>
    %c176 = arith.constant 176 : index
    %c0_57 = arith.constant 0 : index
    %184 = vector.load %arg11[%c176, %c0_57] : memref<392x256xf32, #tpu.memory_space<vmem>>, vector<8x256xf32>
    tpu.vector_store %arg11[%c176, %c0_57], %183 {strides = array<i32>} : memref<392x256xf32, #tpu.memory_space<vmem>>, vector<8x256xf32>,
    %185 = vector.extract_strided_slice %23 {offsets = [0, 255], sizes = [8, 1], strides = [1, 1]} : vector<8x256xf32> to vector<8x1xf32>
    %186 = vector.extract_strided_slice %23 {offsets = [0, 0], sizes = [8, 255], strides = [1, 1]} : vector<8x256xf32> to vector<8x255xf32>
    %187 = tpu.concatenate %185, %186 in 1 : vector<8x1xf32>, vector<8x255xf32> -> vector<8x256xf32>
    %c23 = arith.constant 23 : index
    %c0_58 = arith.constant 0 : index
    %188 = vector.load %arg8[%c23, %c0_58] : memref<49x256xf32, #tpu.memory_space<vmem>>, vector<1x256xf32>
    %189 = vector.broadcast %188 : vector<1x256xf32> to vector<8x256xf32>
    %190 = arith.mulf %187, %189 : vector<8x256xf32>
    %c184 = arith.constant 184 : index
    %c0_59 = arith.constant 0 : index
    %191 = vector.load %arg11[%c184, %c0_59] : memref<392x256xf32, #tpu.memory_space<vmem>>, vector<8x256xf32>
    tpu.vector_store %arg11[%c184, %c0_59], %190 {strides = array<i32>} : memref<392x256xf32, #tpu.memory_space<vmem>>, vector<8x256xf32>,
    %c24_60 = arith.constant 24 : index
    %c0_61 = arith.constant 0 : index
    %192 = vector.load %arg8[%c24_60, %c0_61] : memref<49x256xf32, #tpu.memory_space<vmem>>, vector<1x256xf32>
    %193 = vector.broadcast %192 : vector<1x256xf32> to vector<8x256xf32>
    %194 = arith.mulf %23, %193 : vector<8x256xf32>
    %c192 = arith.constant 192 : index
    %c0_62 = arith.constant 0 : index
    %195 = vector.load %arg11[%c192, %c0_62] : memref<392x256xf32, #tpu.memory_space<vmem>>, vector<8x256xf32>
    tpu.vector_store %arg11[%c192, %c0_62], %194 {strides = array<i32>} : memref<392x256xf32, #tpu.memory_space<vmem>>, vector<8x256xf32>,
    %196 = vector.extract_strided_slice %23 {offsets = [0, 1], sizes = [8, 255], strides = [1, 1]} : vector<8x256xf32> to vector<8x255xf32>
    %197 = vector.extract_strided_slice %23 {offsets = [0, 0], sizes = [8, 1], strides = [1, 1]} : vector<8x256xf32> to vector<8x1xf32>
    %198 = tpu.concatenate %196, %197 in 1 : vector<8x255xf32>, vector<8x1xf32> -> vector<8x256xf32>
    %c25 = arith.constant 25 : index
    %c0_63 = arith.constant 0 : index
    %199 = vector.load %arg8[%c25, %c0_63] : memref<49x256xf32, #tpu.memory_space<vmem>>, vector<1x256xf32>
    %200 = vector.broadcast %199 : vector<1x256xf32> to vector<8x256xf32>
    %201 = arith.mulf %198, %200 : vector<8x256xf32>
    %c200 = arith.constant 200 : index
    %c0_64 = arith.constant 0 : index
    %202 = vector.load %arg11[%c200, %c0_64] : memref<392x256xf32, #tpu.memory_space<vmem>>, vector<8x256xf32>
    tpu.vector_store %arg11[%c200, %c0_64], %201 {strides = array<i32>} : memref<392x256xf32, #tpu.memory_space<vmem>>, vector<8x256xf32>,
    %203 = vector.extract_strided_slice %23 {offsets = [0, 2], sizes = [8, 254], strides = [1, 1]} : vector<8x256xf32> to vector<8x254xf32>
    %204 = vector.extract_strided_slice %23 {offsets = [0, 0], sizes = [8, 2], strides = [1, 1]} : vector<8x256xf32> to vector<8x2xf32>
    %205 = tpu.concatenate %203, %204 in 1 : vector<8x254xf32>, vector<8x2xf32> -> vector<8x256xf32>
    %c26 = arith.constant 26 : index
    %c0_65 = arith.constant 0 : index
    %206 = vector.load %arg8[%c26, %c0_65] : memref<49x256xf32, #tpu.memory_space<vmem>>, vector<1x256xf32>
    %207 = vector.broadcast %206 : vector<1x256xf32> to vector<8x256xf32>
    %208 = arith.mulf %205, %207 : vector<8x256xf32>
    %c208 = arith.constant 208 : index
    %c0_66 = arith.constant 0 : index
    %209 = vector.load %arg11[%c208, %c0_66] : memref<392x256xf32, #tpu.memory_space<vmem>>, vector<8x256xf32>
    tpu.vector_store %arg11[%c208, %c0_66], %208 {strides = array<i32>} : memref<392x256xf32, #tpu.memory_space<vmem>>, vector<8x256xf32>,
    %210 = vector.extract_strided_slice %23 {offsets = [0, 3], sizes = [8, 253], strides = [1, 1]} : vector<8x256xf32> to vector<8x253xf32>
    %211 = vector.extract_strided_slice %23 {offsets = [0, 0], sizes = [8, 3], strides = [1, 1]} : vector<8x256xf32> to vector<8x3xf32>
    %212 = tpu.concatenate %210, %211 in 1 : vector<8x253xf32>, vector<8x3xf32> -> vector<8x256xf32>
    %c27 = arith.constant 27 : index
    %c0_67 = arith.constant 0 : index
    %213 = vector.load %arg8[%c27, %c0_67] : memref<49x256xf32, #tpu.memory_space<vmem>>, vector<1x256xf32>
    %214 = vector.broadcast %213 : vector<1x256xf32> to vector<8x256xf32>
    %215 = arith.mulf %212, %214 : vector<8x256xf32>
    %c216 = arith.constant 216 : index
    %c0_68 = arith.constant 0 : index
    %216 = vector.load %arg11[%c216, %c0_68] : memref<392x256xf32, #tpu.memory_space<vmem>>, vector<8x256xf32>
    tpu.vector_store %arg11[%c216, %c0_68], %215 {strides = array<i32>} : memref<392x256xf32, #tpu.memory_space<vmem>>, vector<8x256xf32>,
    %217 = vector.extract_strided_slice %23 {offsets = [0, 13], sizes = [8, 243], strides = [1, 1]} : vector<8x256xf32> to vector<8x243xf32>
    %218 = vector.extract_strided_slice %23 {offsets = [0, 0], sizes = [8, 13], strides = [1, 1]} : vector<8x256xf32> to vector<8x13xf32>
    %219 = tpu.concatenate %217, %218 in 1 : vector<8x243xf32>, vector<8x13xf32> -> vector<8x256xf32>
    %c28 = arith.constant 28 : index
    %c0_69 = arith.constant 0 : index
    %220 = vector.load %arg8[%c28, %c0_69] : memref<49x256xf32, #tpu.memory_space<vmem>>, vector<1x256xf32>
    %221 = vector.broadcast %220 : vector<1x256xf32> to vector<8x256xf32>
    %222 = arith.mulf %219, %221 : vector<8x256xf32>
    %c224 = arith.constant 224 : index
    %c0_70 = arith.constant 0 : index
    %223 = vector.load %arg11[%c224, %c0_70] : memref<392x256xf32, #tpu.memory_space<vmem>>, vector<8x256xf32>
    tpu.vector_store %arg11[%c224, %c0_70], %222 {strides = array<i32>} : memref<392x256xf32, #tpu.memory_space<vmem>>, vector<8x256xf32>,
    %224 = vector.extract_strided_slice %23 {offsets = [0, 14], sizes = [8, 242], strides = [1, 1]} : vector<8x256xf32> to vector<8x242xf32>
    %225 = vector.extract_strided_slice %23 {offsets = [0, 0], sizes = [8, 14], strides = [1, 1]} : vector<8x256xf32> to vector<8x14xf32>
    %226 = tpu.concatenate %224, %225 in 1 : vector<8x242xf32>, vector<8x14xf32> -> vector<8x256xf32>
    %c29 = arith.constant 29 : index
    %c0_71 = arith.constant 0 : index
    %227 = vector.load %arg8[%c29, %c0_71] : memref<49x256xf32, #tpu.memory_space<vmem>>, vector<1x256xf32>
    %228 = vector.broadcast %227 : vector<1x256xf32> to vector<8x256xf32>
    %229 = arith.mulf %226, %228 : vector<8x256xf32>
    %c232 = arith.constant 232 : index
    %c0_72 = arith.constant 0 : index
    %230 = vector.load %arg11[%c232, %c0_72] : memref<392x256xf32, #tpu.memory_space<vmem>>, vector<8x256xf32>
    tpu.vector_store %arg11[%c232, %c0_72], %229 {strides = array<i32>} : memref<392x256xf32, #tpu.memory_space<vmem>>, vector<8x256xf32>,
    %231 = vector.extract_strided_slice %23 {offsets = [0, 15], sizes = [8, 241], strides = [1, 1]} : vector<8x256xf32> to vector<8x241xf32>
    %232 = vector.extract_strided_slice %23 {offsets = [0, 0], sizes = [8, 15], strides = [1, 1]} : vector<8x256xf32> to vector<8x15xf32>
    %233 = tpu.concatenate %231, %232 in 1 : vector<8x241xf32>, vector<8x15xf32> -> vector<8x256xf32>
    %c30 = arith.constant 30 : index
    %c0_73 = arith.constant 0 : index
    %234 = vector.load %arg8[%c30, %c0_73] : memref<49x256xf32, #tpu.memory_space<vmem>>, vector<1x256xf32>
    %235 = vector.broadcast %234 : vector<1x256xf32> to vector<8x256xf32>
    %236 = arith.mulf %233, %235 : vector<8x256xf32>
    %c240 = arith.constant 240 : index
    %c0_74 = arith.constant 0 : index
    %237 = vector.load %arg11[%c240, %c0_74] : memref<392x256xf32, #tpu.memory_space<vmem>>, vector<8x256xf32>
    tpu.vector_store %arg11[%c240, %c0_74], %236 {strides = array<i32>} : memref<392x256xf32, #tpu.memory_space<vmem>>, vector<8x256xf32>,
    %238 = vector.extract_strided_slice %23 {offsets = [0, 16], sizes = [8, 240], strides = [1, 1]} : vector<8x256xf32> to vector<8x240xf32>
    %239 = vector.extract_strided_slice %23 {offsets = [0, 0], sizes = [8, 16], strides = [1, 1]} : vector<8x256xf32> to vector<8x16xf32>
    %240 = tpu.concatenate %238, %239 in 1 : vector<8x240xf32>, vector<8x16xf32> -> vector<8x256xf32>
    %c31 = arith.constant 31 : index
    %c0_75 = arith.constant 0 : index
    %241 = vector.load %arg8[%c31, %c0_75] : memref<49x256xf32, #tpu.memory_space<vmem>>, vector<1x256xf32>
    %242 = vector.broadcast %241 : vector<1x256xf32> to vector<8x256xf32>
    %243 = arith.mulf %240, %242 : vector<8x256xf32>
    %c248 = arith.constant 248 : index
    %c0_76 = arith.constant 0 : index
    %244 = vector.load %arg11[%c248, %c0_76] : memref<392x256xf32, #tpu.memory_space<vmem>>, vector<8x256xf32>
    tpu.vector_store %arg11[%c248, %c0_76], %243 {strides = array<i32>} : memref<392x256xf32, #tpu.memory_space<vmem>>, vector<8x256xf32>,
    %245 = vector.extract_strided_slice %23 {offsets = [0, 17], sizes = [8, 239], strides = [1, 1]} : vector<8x256xf32> to vector<8x239xf32>
    %246 = vector.extract_strided_slice %23 {offsets = [0, 0], sizes = [8, 17], strides = [1, 1]} : vector<8x256xf32> to vector<8x17xf32>
    %247 = tpu.concatenate %245, %246 in 1 : vector<8x239xf32>, vector<8x17xf32> -> vector<8x256xf32>
    %c32_77 = arith.constant 32 : index
    %c0_78 = arith.constant 0 : index
    %248 = vector.load %arg8[%c32_77, %c0_78] : memref<49x256xf32, #tpu.memory_space<vmem>>, vector<1x256xf32>
    %249 = vector.broadcast %248 : vector<1x256xf32> to vector<8x256xf32>
    %250 = arith.mulf %247, %249 : vector<8x256xf32>
    %c256 = arith.constant 256 : index
    %c0_79 = arith.constant 0 : index
    %251 = vector.load %arg11[%c256, %c0_79] : memref<392x256xf32, #tpu.memory_space<vmem>>, vector<8x256xf32>
    tpu.vector_store %arg11[%c256, %c0_79], %250 {strides = array<i32>} : memref<392x256xf32, #tpu.memory_space<vmem>>, vector<8x256xf32>,
    %252 = vector.extract_strided_slice %23 {offsets = [0, 18], sizes = [8, 238], strides = [1, 1]} : vector<8x256xf32> to vector<8x238xf32>
    %253 = vector.extract_strided_slice %23 {offsets = [0, 0], sizes = [8, 18], strides = [1, 1]} : vector<8x256xf32> to vector<8x18xf32>
    %254 = tpu.concatenate %252, %253 in 1 : vector<8x238xf32>, vector<8x18xf32> -> vector<8x256xf32>
    %c33 = arith.constant 33 : index
    %c0_80 = arith.constant 0 : index
    %255 = vector.load %arg8[%c33, %c0_80] : memref<49x256xf32, #tpu.memory_space<vmem>>, vector<1x256xf32>
    %256 = vector.broadcast %255 : vector<1x256xf32> to vector<8x256xf32>
    %257 = arith.mulf %254, %256 : vector<8x256xf32>
    %c264 = arith.constant 264 : index
    %c0_81 = arith.constant 0 : index
    %258 = vector.load %arg11[%c264, %c0_81] : memref<392x256xf32, #tpu.memory_space<vmem>>, vector<8x256xf32>
    tpu.vector_store %arg11[%c264, %c0_81], %257 {strides = array<i32>} : memref<392x256xf32, #tpu.memory_space<vmem>>, vector<8x256xf32>,
    %259 = vector.extract_strided_slice %23 {offsets = [0, 19], sizes = [8, 237], strides = [1, 1]} : vector<8x256xf32> to vector<8x237xf32>
    %260 = vector.extract_strided_slice %23 {offsets = [0, 0], sizes = [8, 19], strides = [1, 1]} : vector<8x256xf32> to vector<8x19xf32>
    %261 = tpu.concatenate %259, %260 in 1 : vector<8x237xf32>, vector<8x19xf32> -> vector<8x256xf32>
    %c34 = arith.constant 34 : index
    %c0_82 = arith.constant 0 : index
    %262 = vector.load %arg8[%c34, %c0_82] : memref<49x256xf32, #tpu.memory_space<vmem>>, vector<1x256xf32>
    %263 = vector.broadcast %262 : vector<1x256xf32> to vector<8x256xf32>
    %264 = arith.mulf %261, %263 : vector<8x256xf32>
    %c272 = arith.constant 272 : index
    %c0_83 = arith.constant 0 : index
    %265 = vector.load %arg11[%c272, %c0_83] : memref<392x256xf32, #tpu.memory_space<vmem>>, vector<8x256xf32>
    tpu.vector_store %arg11[%c272, %c0_83], %264 {strides = array<i32>} : memref<392x256xf32, #tpu.memory_space<vmem>>, vector<8x256xf32>,
    %266 = vector.extract_strided_slice %23 {offsets = [0, 29], sizes = [8, 227], strides = [1, 1]} : vector<8x256xf32> to vector<8x227xf32>
    %267 = vector.extract_strided_slice %23 {offsets = [0, 0], sizes = [8, 29], strides = [1, 1]} : vector<8x256xf32> to vector<8x29xf32>
    %268 = tpu.concatenate %266, %267 in 1 : vector<8x227xf32>, vector<8x29xf32> -> vector<8x256xf32>
    %c35 = arith.constant 35 : index
    %c0_84 = arith.constant 0 : index
    %269 = vector.load %arg8[%c35, %c0_84] : memref<49x256xf32, #tpu.memory_space<vmem>>, vector<1x256xf32>
    %270 = vector.broadcast %269 : vector<1x256xf32> to vector<8x256xf32>
    %271 = arith.mulf %268, %270 : vector<8x256xf32>
    %c280 = arith.constant 280 : index
    %c0_85 = arith.constant 0 : index
    %272 = vector.load %arg11[%c280, %c0_85] : memref<392x256xf32, #tpu.memory_space<vmem>>, vector<8x256xf32>
    tpu.vector_store %arg11[%c280, %c0_85], %271 {strides = array<i32>} : memref<392x256xf32, #tpu.memory_space<vmem>>, vector<8x256xf32>,
    %273 = vector.extract_strided_slice %23 {offsets = [0, 30], sizes = [8, 226], strides = [1, 1]} : vector<8x256xf32> to vector<8x226xf32>
    %274 = vector.extract_strided_slice %23 {offsets = [0, 0], sizes = [8, 30], strides = [1, 1]} : vector<8x256xf32> to vector<8x30xf32>
    %275 = tpu.concatenate %273, %274 in 1 : vector<8x226xf32>, vector<8x30xf32> -> vector<8x256xf32>
    %c36 = arith.constant 36 : index
    %c0_86 = arith.constant 0 : index
    %276 = vector.load %arg8[%c36, %c0_86] : memref<49x256xf32, #tpu.memory_space<vmem>>, vector<1x256xf32>
    %277 = vector.broadcast %276 : vector<1x256xf32> to vector<8x256xf32>
    %278 = arith.mulf %275, %277 : vector<8x256xf32>
    %c288 = arith.constant 288 : index
    %c0_87 = arith.constant 0 : index
    %279 = vector.load %arg11[%c288, %c0_87] : memref<392x256xf32, #tpu.memory_space<vmem>>, vector<8x256xf32>
    tpu.vector_store %arg11[%c288, %c0_87], %278 {strides = array<i32>} : memref<392x256xf32, #tpu.memory_space<vmem>>, vector<8x256xf32>,
    %280 = vector.extract_strided_slice %23 {offsets = [0, 31], sizes = [8, 225], strides = [1, 1]} : vector<8x256xf32> to vector<8x225xf32>
    %281 = vector.extract_strided_slice %23 {offsets = [0, 0], sizes = [8, 31], strides = [1, 1]} : vector<8x256xf32> to vector<8x31xf32>
    %282 = tpu.concatenate %280, %281 in 1 : vector<8x225xf32>, vector<8x31xf32> -> vector<8x256xf32>
    %c37 = arith.constant 37 : index
    %c0_88 = arith.constant 0 : index
    %283 = vector.load %arg8[%c37, %c0_88] : memref<49x256xf32, #tpu.memory_space<vmem>>, vector<1x256xf32>
    %284 = vector.broadcast %283 : vector<1x256xf32> to vector<8x256xf32>
    %285 = arith.mulf %282, %284 : vector<8x256xf32>
    %c296 = arith.constant 296 : index
    %c0_89 = arith.constant 0 : index
    %286 = vector.load %arg11[%c296, %c0_89] : memref<392x256xf32, #tpu.memory_space<vmem>>, vector<8x256xf32>
    tpu.vector_store %arg11[%c296, %c0_89], %285 {strides = array<i32>} : memref<392x256xf32, #tpu.memory_space<vmem>>, vector<8x256xf32>,
    %287 = vector.extract_strided_slice %23 {offsets = [0, 32], sizes = [8, 224], strides = [1, 1]} : vector<8x256xf32> to vector<8x224xf32>
    %288 = vector.extract_strided_slice %23 {offsets = [0, 0], sizes = [8, 32], strides = [1, 1]} : vector<8x256xf32> to vector<8x32xf32>
    %289 = tpu.concatenate %287, %288 in 1 : vector<8x224xf32>, vector<8x32xf32> -> vector<8x256xf32>
    %c38 = arith.constant 38 : index
    %c0_90 = arith.constant 0 : index
    %290 = vector.load %arg8[%c38, %c0_90] : memref<49x256xf32, #tpu.memory_space<vmem>>, vector<1x256xf32>
    %291 = vector.broadcast %290 : vector<1x256xf32> to vector<8x256xf32>
    %292 = arith.mulf %289, %291 : vector<8x256xf32>
    %c304 = arith.constant 304 : index
    %c0_91 = arith.constant 0 : index
    %293 = vector.load %arg11[%c304, %c0_91] : memref<392x256xf32, #tpu.memory_space<vmem>>, vector<8x256xf32>
    tpu.vector_store %arg11[%c304, %c0_91], %292 {strides = array<i32>} : memref<392x256xf32, #tpu.memory_space<vmem>>, vector<8x256xf32>,
    %294 = vector.extract_strided_slice %23 {offsets = [0, 33], sizes = [8, 223], strides = [1, 1]} : vector<8x256xf32> to vector<8x223xf32>
    %295 = vector.extract_strided_slice %23 {offsets = [0, 0], sizes = [8, 33], strides = [1, 1]} : vector<8x256xf32> to vector<8x33xf32>
    %296 = tpu.concatenate %294, %295 in 1 : vector<8x223xf32>, vector<8x33xf32> -> vector<8x256xf32>
    %c39 = arith.constant 39 : index
    %c0_92 = arith.constant 0 : index
    %297 = vector.load %arg8[%c39, %c0_92] : memref<49x256xf32, #tpu.memory_space<vmem>>, vector<1x256xf32>
    %298 = vector.broadcast %297 : vector<1x256xf32> to vector<8x256xf32>
    %299 = arith.mulf %296, %298 : vector<8x256xf32>
    %c312 = arith.constant 312 : index
    %c0_93 = arith.constant 0 : index
    %300 = vector.load %arg11[%c312, %c0_93] : memref<392x256xf32, #tpu.memory_space<vmem>>, vector<8x256xf32>
    tpu.vector_store %arg11[%c312, %c0_93], %299 {strides = array<i32>} : memref<392x256xf32, #tpu.memory_space<vmem>>, vector<8x256xf32>,
    %301 = vector.extract_strided_slice %23 {offsets = [0, 34], sizes = [8, 222], strides = [1, 1]} : vector<8x256xf32> to vector<8x222xf32>
    %302 = vector.extract_strided_slice %23 {offsets = [0, 0], sizes = [8, 34], strides = [1, 1]} : vector<8x256xf32> to vector<8x34xf32>
    %303 = tpu.concatenate %301, %302 in 1 : vector<8x222xf32>, vector<8x34xf32> -> vector<8x256xf32>
    %c40_94 = arith.constant 40 : index
    %c0_95 = arith.constant 0 : index
    %304 = vector.load %arg8[%c40_94, %c0_95] : memref<49x256xf32, #tpu.memory_space<vmem>>, vector<1x256xf32>
    %305 = vector.broadcast %304 : vector<1x256xf32> to vector<8x256xf32>
    %306 = arith.mulf %303, %305 : vector<8x256xf32>
    %c320 = arith.constant 320 : index
    %c0_96 = arith.constant 0 : index
    %307 = vector.load %arg11[%c320, %c0_96] : memref<392x256xf32, #tpu.memory_space<vmem>>, vector<8x256xf32>
    tpu.vector_store %arg11[%c320, %c0_96], %306 {strides = array<i32>} : memref<392x256xf32, #tpu.memory_space<vmem>>, vector<8x256xf32>,
    %308 = vector.extract_strided_slice %23 {offsets = [0, 35], sizes = [8, 221], strides = [1, 1]} : vector<8x256xf32> to vector<8x221xf32>
    %309 = vector.extract_strided_slice %23 {offsets = [0, 0], sizes = [8, 35], strides = [1, 1]} : vector<8x256xf32> to vector<8x35xf32>
    %310 = tpu.concatenate %308, %309 in 1 : vector<8x221xf32>, vector<8x35xf32> -> vector<8x256xf32>
    %c41 = arith.constant 41 : index
    %c0_97 = arith.constant 0 : index
    %311 = vector.load %arg8[%c41, %c0_97] : memref<49x256xf32, #tpu.memory_space<vmem>>, vector<1x256xf32>
    %312 = vector.broadcast %311 : vector<1x256xf32> to vector<8x256xf32>
    %313 = arith.mulf %310, %312 : vector<8x256xf32>
    %c328 = arith.constant 328 : index
    %c0_98 = arith.constant 0 : index
    %314 = vector.load %arg11[%c328, %c0_98] : memref<392x256xf32, #tpu.memory_space<vmem>>, vector<8x256xf32>
    tpu.vector_store %arg11[%c328, %c0_98], %313 {strides = array<i32>} : memref<392x256xf32, #tpu.memory_space<vmem>>, vector<8x256xf32>,
    %315 = vector.extract_strided_slice %23 {offsets = [0, 45], sizes = [8, 211], strides = [1, 1]} : vector<8x256xf32> to vector<8x211xf32>
    %316 = vector.extract_strided_slice %23 {offsets = [0, 0], sizes = [8, 45], strides = [1, 1]} : vector<8x256xf32> to vector<8x45xf32>
    %317 = tpu.concatenate %315, %316 in 1 : vector<8x211xf32>, vector<8x45xf32> -> vector<8x256xf32>
    %c42 = arith.constant 42 : index
    %c0_99 = arith.constant 0 : index
    %318 = vector.load %arg8[%c42, %c0_99] : memref<49x256xf32, #tpu.memory_space<vmem>>, vector<1x256xf32>
    %319 = vector.broadcast %318 : vector<1x256xf32> to vector<8x256xf32>
    %320 = arith.mulf %317, %319 : vector<8x256xf32>
    %c336 = arith.constant 336 : index
    %c0_100 = arith.constant 0 : index
    %321 = vector.load %arg11[%c336, %c0_100] : memref<392x256xf32, #tpu.memory_space<vmem>>, vector<8x256xf32>
    tpu.vector_store %arg11[%c336, %c0_100], %320 {strides = array<i32>} : memref<392x256xf32, #tpu.memory_space<vmem>>, vector<8x256xf32>,
    %322 = vector.extract_strided_slice %23 {offsets = [0, 46], sizes = [8, 210], strides = [1, 1]} : vector<8x256xf32> to vector<8x210xf32>
    %323 = vector.extract_strided_slice %23 {offsets = [0, 0], sizes = [8, 46], strides = [1, 1]} : vector<8x256xf32> to vector<8x46xf32>
    %324 = tpu.concatenate %322, %323 in 1 : vector<8x210xf32>, vector<8x46xf32> -> vector<8x256xf32>
    %c43 = arith.constant 43 : index
    %c0_101 = arith.constant 0 : index
    %325 = vector.load %arg8[%c43, %c0_101] : memref<49x256xf32, #tpu.memory_space<vmem>>, vector<1x256xf32>
    %326 = vector.broadcast %325 : vector<1x256xf32> to vector<8x256xf32>
    %327 = arith.mulf %324, %326 : vector<8x256xf32>
    %c344 = arith.constant 344 : index
    %c0_102 = arith.constant 0 : index
    %328 = vector.load %arg11[%c344, %c0_102] : memref<392x256xf32, #tpu.memory_space<vmem>>, vector<8x256xf32>
    tpu.vector_store %arg11[%c344, %c0_102], %327 {strides = array<i32>} : memref<392x256xf32, #tpu.memory_space<vmem>>, vector<8x256xf32>,
    %329 = vector.extract_strided_slice %23 {offsets = [0, 47], sizes = [8, 209], strides = [1, 1]} : vector<8x256xf32> to vector<8x209xf32>
    %330 = vector.extract_strided_slice %23 {offsets = [0, 0], sizes = [8, 47], strides = [1, 1]} : vector<8x256xf32> to vector<8x47xf32>
    %331 = tpu.concatenate %329, %330 in 1 : vector<8x209xf32>, vector<8x47xf32> -> vector<8x256xf32>
    %c44 = arith.constant 44 : index
    %c0_103 = arith.constant 0 : index
    %332 = vector.load %arg8[%c44, %c0_103] : memref<49x256xf32, #tpu.memory_space<vmem>>, vector<1x256xf32>
    %333 = vector.broadcast %332 : vector<1x256xf32> to vector<8x256xf32>
    %334 = arith.mulf %331, %333 : vector<8x256xf32>
    %c352 = arith.constant 352 : index
    %c0_104 = arith.constant 0 : index
    %335 = vector.load %arg11[%c352, %c0_104] : memref<392x256xf32, #tpu.memory_space<vmem>>, vector<8x256xf32>
    tpu.vector_store %arg11[%c352, %c0_104], %334 {strides = array<i32>} : memref<392x256xf32, #tpu.memory_space<vmem>>, vector<8x256xf32>,
    %336 = vector.extract_strided_slice %23 {offsets = [0, 48], sizes = [8, 208], strides = [1, 1]} : vector<8x256xf32> to vector<8x208xf32>
    %337 = vector.extract_strided_slice %23 {offsets = [0, 0], sizes = [8, 48], strides = [1, 1]} : vector<8x256xf32> to vector<8x48xf32>
    %338 = tpu.concatenate %336, %337 in 1 : vector<8x208xf32>, vector<8x48xf32> -> vector<8x256xf32>
    %c45 = arith.constant 45 : index
    %c0_105 = arith.constant 0 : index
    %339 = vector.load %arg8[%c45, %c0_105] : memref<49x256xf32, #tpu.memory_space<vmem>>, vector<1x256xf32>
    %340 = vector.broadcast %339 : vector<1x256xf32> to vector<8x256xf32>
    %341 = arith.mulf %338, %340 : vector<8x256xf32>
    %c360 = arith.constant 360 : index
    %c0_106 = arith.constant 0 : index
    %342 = vector.load %arg11[%c360, %c0_106] : memref<392x256xf32, #tpu.memory_space<vmem>>, vector<8x256xf32>
    tpu.vector_store %arg11[%c360, %c0_106], %341 {strides = array<i32>} : memref<392x256xf32, #tpu.memory_space<vmem>>, vector<8x256xf32>,
    %343 = vector.extract_strided_slice %23 {offsets = [0, 49], sizes = [8, 207], strides = [1, 1]} : vector<8x256xf32> to vector<8x207xf32>
    %344 = vector.extract_strided_slice %23 {offsets = [0, 0], sizes = [8, 49], strides = [1, 1]} : vector<8x256xf32> to vector<8x49xf32>
    %345 = tpu.concatenate %343, %344 in 1 : vector<8x207xf32>, vector<8x49xf32> -> vector<8x256xf32>
    %c46 = arith.constant 46 : index
    %c0_107 = arith.constant 0 : index
    %346 = vector.load %arg8[%c46, %c0_107] : memref<49x256xf32, #tpu.memory_space<vmem>>, vector<1x256xf32>
    %347 = vector.broadcast %346 : vector<1x256xf32> to vector<8x256xf32>
    %348 = arith.mulf %345, %347 : vector<8x256xf32>
    %c368 = arith.constant 368 : index
    %c0_108 = arith.constant 0 : index
    %349 = vector.load %arg11[%c368, %c0_108] : memref<392x256xf32, #tpu.memory_space<vmem>>, vector<8x256xf32>
    tpu.vector_store %arg11[%c368, %c0_108], %348 {strides = array<i32>} : memref<392x256xf32, #tpu.memory_space<vmem>>, vector<8x256xf32>,
    %350 = vector.extract_strided_slice %23 {offsets = [0, 50], sizes = [8, 206], strides = [1, 1]} : vector<8x256xf32> to vector<8x206xf32>
    %351 = vector.extract_strided_slice %23 {offsets = [0, 0], sizes = [8, 50], strides = [1, 1]} : vector<8x256xf32> to vector<8x50xf32>
    %352 = tpu.concatenate %350, %351 in 1 : vector<8x206xf32>, vector<8x50xf32> -> vector<8x256xf32>
    %c47 = arith.constant 47 : index
    %c0_109 = arith.constant 0 : index
    %353 = vector.load %arg8[%c47, %c0_109] : memref<49x256xf32, #tpu.memory_space<vmem>>, vector<1x256xf32>
    %354 = vector.broadcast %353 : vector<1x256xf32> to vector<8x256xf32>
    %355 = arith.mulf %352, %354 : vector<8x256xf32>
    %c376 = arith.constant 376 : index
    %c0_110 = arith.constant 0 : index
    %356 = vector.load %arg11[%c376, %c0_110] : memref<392x256xf32, #tpu.memory_space<vmem>>, vector<8x256xf32>
    tpu.vector_store %arg11[%c376, %c0_110], %355 {strides = array<i32>} : memref<392x256xf32, #tpu.memory_space<vmem>>, vector<8x256xf32>,
    %357 = vector.extract_strided_slice %23 {offsets = [0, 51], sizes = [8, 205], strides = [1, 1]} : vector<8x256xf32> to vector<8x205xf32>
    %358 = vector.extract_strided_slice %23 {offsets = [0, 0], sizes = [8, 51], strides = [1, 1]} : vector<8x256xf32> to vector<8x51xf32>
    %359 = tpu.concatenate %357, %358 in 1 : vector<8x205xf32>, vector<8x51xf32> -> vector<8x256xf32>
    %c48_111 = arith.constant 48 : index
    %c0_112 = arith.constant 0 : index
    %360 = vector.load %arg8[%c48_111, %c0_112] : memref<49x256xf32, #tpu.memory_space<vmem>>, vector<1x256xf32>
    %361 = vector.broadcast %360 : vector<1x256xf32> to vector<8x256xf32>
    %362 = arith.mulf %359, %361 : vector<8x256xf32>
    %c384 = arith.constant 384 : index
    %c0_113 = arith.constant 0 : index
    %363 = vector.load %arg11[%c384, %c0_113] : memref<392x256xf32, #tpu.memory_space<vmem>>, vector<8x256xf32>
    tpu.vector_store %arg11[%c384, %c0_113], %362 {strides = array<i32>} : memref<392x256xf32, #tpu.memory_space<vmem>>, vector<8x256xf32>,
    %c0_114 = arith.constant 0 : index
    %c0_115 = arith.constant 0 : index
    %364 = vector.load %arg3[%c0_114, %c0_115] : memref<1x392xf32, #tpu.memory_space<vmem>>, vector<1x392xf32>
    %c0_116 = arith.constant 0 : index
    %c0_117 = arith.constant 0 : index
    %365 = vector.load %arg11[%c0_116, %c0_117] : memref<392x256xf32, #tpu.memory_space<vmem>>, vector<392x256xf32>
    %cst_118 = arith.constant dense<0.000000e+00> : vector<1x256xf32>
    %366 = tpu.matmul %364, %365, %cst_118 {dimension_numbers = #tpu.dot_dimension_numbers<[1], [0], [0], [1], [0, 0, 1, 1], [], []>} : vector<1x392xf32>, vector<392x256xf32>, vector<1x256xf32> -> vector<1x256xf32>
    %cst_119 = arith.constant 0.000000e+00 : f32
    %367 = vector.broadcast %cst_119 : f32 to vector<1x256xf32>
    %368 = arith.subf %367, %366 : vector<1x256xf32>
    %369 = math.exp %368 : vector<1x256xf32>
    %cst_120 = arith.constant 1.000000e+00 : f32
    %370 = vector.broadcast %cst_120 : f32 to vector<1x256xf32>
    %371 = arith.addf %370, %369 : vector<1x256xf32>
    %372 = tpu.reciprocal %371 {approx = true} : vector<1x256xf32> -> vector<1x256xf32>
    %373 = vector.broadcast %372 : vector<1x256xf32> to vector<32x256xf32>
    %374 = arith.mulf %2, %373 : vector<32x256xf32>
    %cst_121 = arith.constant dense<0.000000e+00> : vector<32xf32>
    %375 = vector.multi_reduction <add>, %5, %cst_121 [1] : vector<32x256xf32> to vector<32xf32>
    %376 = vector.shape_cast %375 : vector<32xf32> to vector<32x1xf32>
    %cst_122 = arith.constant 2.560000e+02 : f32
    %377 = vector.broadcast %cst_122 : f32 to vector<32x1xf32>
    %378 = arith.divf %376, %377 : vector<32x1xf32>
    %cst_123 = arith.constant dense<0xFF800000> : vector<32xf32>
    %379 = vector.multi_reduction <maximumf>, %5, %cst_123 [1] : vector<32x256xf32> to vector<32xf32>
    %380 = vector.shape_cast %379 : vector<32xf32> to vector<32x1xf32>
    %c0_124 = arith.constant 0 : index
    %c0_125 = arith.constant 0 : index
    %381 = vector.load %arg4[%c0_124, %c0_125] : memref<32x2xf32, #tpu.memory_space<vmem>>, vector<32x2xf32>
    %c0_126 = arith.constant 0 : index
    %c0_127 = arith.constant 0 : index
    %382 = vector.load %arg5[%c0_126, %c0_127] : memref<32x2xf32, #tpu.memory_space<vmem>>, vector<32x2xf32>
    %383 = vector.broadcast %378 : vector<32x1xf32> to vector<32x2xf32>
    %384 = arith.mulf %381, %383 : vector<32x2xf32>
    %cst_128 = arith.constant dense<0.000000e+00> : vector<2xf32>
    %385 = vector.multi_reduction <add>, %384, %cst_128 [0] : vector<32x2xf32> to vector<2xf32>
    %386 = vector.shape_cast %385 : vector<2xf32> to vector<1x2xf32>
    %cst_129 = arith.constant 0.000000e+00 : f32
    %387 = vector.broadcast %cst_129 : f32 to vector<1x2xf32>
    %388 = arith.maximumf %386, %387 : vector<1x2xf32>
    %389 = vector.broadcast %388 : vector<1x2xf32> to vector<32x2xf32>
    %390 = arith.mulf %382, %389 : vector<32x2xf32>
    %cst_130 = arith.constant dense<0.000000e+00> : vector<32xf32>
    %391 = vector.multi_reduction <add>, %390, %cst_130 [1] : vector<32x2xf32> to vector<32xf32>
    %392 = vector.shape_cast %391 : vector<32xf32> to vector<32x1xf32>
    %393 = vector.broadcast %380 : vector<32x1xf32> to vector<32x2xf32>
    %394 = arith.mulf %381, %393 : vector<32x2xf32>
    %cst_131 = arith.constant dense<0.000000e+00> : vector<2xf32>
    %395 = vector.multi_reduction <add>, %394, %cst_131 [0] : vector<32x2xf32> to vector<2xf32>
    %396 = vector.shape_cast %395 : vector<2xf32> to vector<1x2xf32>
    %cst_132 = arith.constant 0.000000e+00 : f32
    %397 = vector.broadcast %cst_132 : f32 to vector<1x2xf32>
    %398 = arith.maximumf %396, %397 : vector<1x2xf32>
    %399 = vector.broadcast %398 : vector<1x2xf32> to vector<32x2xf32>
    %400 = arith.mulf %382, %399 : vector<32x2xf32>
    %cst_133 = arith.constant dense<0.000000e+00> : vector<32xf32>
    %401 = vector.multi_reduction <add>, %400, %cst_133 [1] : vector<32x2xf32> to vector<32xf32>
    %402 = vector.shape_cast %401 : vector<32xf32> to vector<32x1xf32>
    %403 = arith.addf %392, %402 : vector<32x1xf32>
    %cst_134 = arith.constant 0.000000e+00 : f32
    %404 = vector.broadcast %cst_134 : f32 to vector<32x1xf32>
    %405 = arith.subf %404, %403 : vector<32x1xf32>
    %406 = math.exp %405 : vector<32x1xf32>
    %cst_135 = arith.constant 1.000000e+00 : f32
    %407 = vector.broadcast %cst_135 : f32 to vector<32x1xf32>
    %408 = arith.addf %407, %406 : vector<32x1xf32>
    %409 = tpu.reciprocal %408 {approx = true} : vector<32x1xf32> -> vector<32x1xf32>
    %410 = vector.broadcast %409 : vector<32x1xf32> to vector<32x256xf32>
    %411 = arith.mulf %5, %410 : vector<32x256xf32>
    %412 = tpu.concatenate %374, %411 in 0 : vector<32x256xf32>, vector<32x256xf32> -> vector<64x256xf32>
    %413 = arith.truncf %412 : vector<64x256xf32> to vector<64x256xbf16>
    %414 = vector.extract_strided_slice %413 {offsets = [0, 239], sizes = [64, 17], strides = [1, 1]} : vector<64x256xbf16> to vector<64x17xbf16>
    %415 = vector.extract_strided_slice %413 {offsets = [0, 0], sizes = [64, 239], strides = [1, 1]} : vector<64x256xbf16> to vector<64x239xbf16>
    %416 = tpu.concatenate %414, %415 in 1 : vector<64x17xbf16>, vector<64x239xbf16> -> vector<64x256xbf16>
    %c0_136 = arith.constant 0 : index
    %c0_137 = arith.constant 0 : index
    %417 = vector.load %arg9[%c0_136, %c0_137] : memref<9x256xf32, #tpu.memory_space<vmem>>, vector<1x256xf32>
    %418 = arith.extf %416 : vector<64x256xbf16> to vector<64x256xf32>
    %419 = vector.broadcast %417 : vector<1x256xf32> to vector<64x256xf32>
    %420 = arith.mulf %418, %419 : vector<64x256xf32>
    %421 = arith.truncf %420 : vector<64x256xf32> to vector<64x256xbf16>
    %c0_138 = arith.constant 0 : index
    %c0_139 = arith.constant 0 : index
    %422 = vector.load %arg12[%c0_138, %c0_139] : memref<576x256xbf16, #tpu.memory_space<vmem>>, vector<64x256xbf16>
    tpu.vector_store %arg12[%c0_138, %c0_139], %421 {strides = array<i32>} : memref<576x256xbf16, #tpu.memory_space<vmem>>, vector<64x256xbf16>,
    %423 = vector.extract_strided_slice %413 {offsets = [0, 240], sizes = [64, 16], strides = [1, 1]} : vector<64x256xbf16> to vector<64x16xbf16>
    %424 = vector.extract_strided_slice %413 {offsets = [0, 0], sizes = [64, 240], strides = [1, 1]} : vector<64x256xbf16> to vector<64x240xbf16>
    %425 = tpu.concatenate %423, %424 in 1 : vector<64x16xbf16>, vector<64x240xbf16> -> vector<64x256xbf16>
    %c1_140 = arith.constant 1 : index
    %c0_141 = arith.constant 0 : index
    %426 = vector.load %arg9[%c1_140, %c0_141] : memref<9x256xf32, #tpu.memory_space<vmem>>, vector<1x256xf32>
    %427 = arith.extf %425 : vector<64x256xbf16> to vector<64x256xf32>
    %428 = vector.broadcast %426 : vector<1x256xf32> to vector<64x256xf32>
    %429 = arith.mulf %427, %428 : vector<64x256xf32>
    %430 = arith.truncf %429 : vector<64x256xf32> to vector<64x256xbf16>
    %c64_142 = arith.constant 64 : index
    %c0_143 = arith.constant 0 : index
    %431 = vector.load %arg12[%c64_142, %c0_143] : memref<576x256xbf16, #tpu.memory_space<vmem>>, vector<64x256xbf16>
    tpu.vector_store %arg12[%c64_142, %c0_143], %430 {strides = array<i32>} : memref<576x256xbf16, #tpu.memory_space<vmem>>, vector<64x256xbf16>,
    %432 = vector.extract_strided_slice %413 {offsets = [0, 241], sizes = [64, 15], strides = [1, 1]} : vector<64x256xbf16> to vector<64x15xbf16>
    %433 = vector.extract_strided_slice %413 {offsets = [0, 0], sizes = [64, 241], strides = [1, 1]} : vector<64x256xbf16> to vector<64x241xbf16>
    %434 = tpu.concatenate %432, %433 in 1 : vector<64x15xbf16>, vector<64x241xbf16> -> vector<64x256xbf16>
    %c2_144 = arith.constant 2 : index
    %c0_145 = arith.constant 0 : index
    %435 = vector.load %arg9[%c2_144, %c0_145] : memref<9x256xf32, #tpu.memory_space<vmem>>, vector<1x256xf32>
    %436 = arith.extf %434 : vector<64x256xbf16> to vector<64x256xf32>
    %437 = vector.broadcast %435 : vector<1x256xf32> to vector<64x256xf32>
    %438 = arith.mulf %436, %437 : vector<64x256xf32>
    %439 = arith.truncf %438 : vector<64x256xf32> to vector<64x256xbf16>
    %c128_146 = arith.constant 128 : index
    %c0_147 = arith.constant 0 : index
    %440 = vector.load %arg12[%c128_146, %c0_147] : memref<576x256xbf16, #tpu.memory_space<vmem>>, vector<64x256xbf16>
    tpu.vector_store %arg12[%c128_146, %c0_147], %439 {strides = array<i32>} : memref<576x256xbf16, #tpu.memory_space<vmem>>, vector<64x256xbf16>,
    %441 = vector.extract_strided_slice %413 {offsets = [0, 255], sizes = [64, 1], strides = [1, 1]} : vector<64x256xbf16> to vector<64x1xbf16>
    %442 = vector.extract_strided_slice %413 {offsets = [0, 0], sizes = [64, 255], strides = [1, 1]} : vector<64x256xbf16> to vector<64x255xbf16>
    %443 = tpu.concatenate %441, %442 in 1 : vector<64x1xbf16>, vector<64x255xbf16> -> vector<64x256xbf16>
    %c3_148 = arith.constant 3 : index
    %c0_149 = arith.constant 0 : index
    %444 = vector.load %arg9[%c3_148, %c0_149] : memref<9x256xf32, #tpu.memory_space<vmem>>, vector<1x256xf32>
    %445 = arith.extf %443 : vector<64x256xbf16> to vector<64x256xf32>
    %446 = vector.broadcast %444 : vector<1x256xf32> to vector<64x256xf32>
    %447 = arith.mulf %445, %446 : vector<64x256xf32>
    %448 = arith.truncf %447 : vector<64x256xf32> to vector<64x256xbf16>
    %c192_150 = arith.constant 192 : index
    %c0_151 = arith.constant 0 : index
    %449 = vector.load %arg12[%c192_150, %c0_151] : memref<576x256xbf16, #tpu.memory_space<vmem>>, vector<64x256xbf16>
    tpu.vector_store %arg12[%c192_150, %c0_151], %448 {strides = array<i32>} : memref<576x256xbf16, #tpu.memory_space<vmem>>, vector<64x256xbf16>,
    %c4_152 = arith.constant 4 : index
    %c0_153 = arith.constant 0 : index
    %450 = vector.load %arg9[%c4_152, %c0_153] : memref<9x256xf32, #tpu.memory_space<vmem>>, vector<1x256xf32>
    %451 = arith.extf %413 : vector<64x256xbf16> to vector<64x256xf32>
    %452 = vector.broadcast %450 : vector<1x256xf32> to vector<64x256xf32>
    %453 = arith.mulf %451, %452 : vector<64x256xf32>
    %454 = arith.truncf %453 : vector<64x256xf32> to vector<64x256xbf16>
    %c256_154 = arith.constant 256 : index
    %c0_155 = arith.constant 0 : index
    %455 = vector.load %arg12[%c256_154, %c0_155] : memref<576x256xbf16, #tpu.memory_space<vmem>>, vector<64x256xbf16>
    tpu.vector_store %arg12[%c256_154, %c0_155], %454 {strides = array<i32>} : memref<576x256xbf16, #tpu.memory_space<vmem>>, vector<64x256xbf16>,
    %456 = vector.extract_strided_slice %413 {offsets = [0, 1], sizes = [64, 255], strides = [1, 1]} : vector<64x256xbf16> to vector<64x255xbf16>
    %457 = vector.extract_strided_slice %413 {offsets = [0, 0], sizes = [64, 1], strides = [1, 1]} : vector<64x256xbf16> to vector<64x1xbf16>
    %458 = tpu.concatenate %456, %457 in 1 : vector<64x255xbf16>, vector<64x1xbf16> -> vector<64x256xbf16>
    %c5_156 = arith.constant 5 : index
    %c0_157 = arith.constant 0 : index
    %459 = vector.load %arg9[%c5_156, %c0_157] : memref<9x256xf32, #tpu.memory_space<vmem>>, vector<1x256xf32>
    %460 = arith.extf %458 : vector<64x256xbf16> to vector<64x256xf32>
    %461 = vector.broadcast %459 : vector<1x256xf32> to vector<64x256xf32>
    %462 = arith.mulf %460, %461 : vector<64x256xf32>
    %463 = arith.truncf %462 : vector<64x256xf32> to vector<64x256xbf16>
    %c320_158 = arith.constant 320 : index
    %c0_159 = arith.constant 0 : index
    %464 = vector.load %arg12[%c320_158, %c0_159] : memref<576x256xbf16, #tpu.memory_space<vmem>>, vector<64x256xbf16>
    tpu.vector_store %arg12[%c320_158, %c0_159], %463 {strides = array<i32>} : memref<576x256xbf16, #tpu.memory_space<vmem>>, vector<64x256xbf16>,
    %465 = vector.extract_strided_slice %413 {offsets = [0, 15], sizes = [64, 241], strides = [1, 1]} : vector<64x256xbf16> to vector<64x241xbf16>
    %466 = vector.extract_strided_slice %413 {offsets = [0, 0], sizes = [64, 15], strides = [1, 1]} : vector<64x256xbf16> to vector<64x15xbf16>
    %467 = tpu.concatenate %465, %466 in 1 : vector<64x241xbf16>, vector<64x15xbf16> -> vector<64x256xbf16>
    %c6_160 = arith.constant 6 : index
    %c0_161 = arith.constant 0 : index
    %468 = vector.load %arg9[%c6_160, %c0_161] : memref<9x256xf32, #tpu.memory_space<vmem>>, vector<1x256xf32>
    %469 = arith.extf %467 : vector<64x256xbf16> to vector<64x256xf32>
    %470 = vector.broadcast %468 : vector<1x256xf32> to vector<64x256xf32>
    %471 = arith.mulf %469, %470 : vector<64x256xf32>
    %472 = arith.truncf %471 : vector<64x256xf32> to vector<64x256xbf16>
    %c384_162 = arith.constant 384 : index
    %c0_163 = arith.constant 0 : index
    %473 = vector.load %arg12[%c384_162, %c0_163] : memref<576x256xbf16, #tpu.memory_space<vmem>>, vector<64x256xbf16>
    tpu.vector_store %arg12[%c384_162, %c0_163], %472 {strides = array<i32>} : memref<576x256xbf16, #tpu.memory_space<vmem>>, vector<64x256xbf16>,
    %474 = vector.extract_strided_slice %413 {offsets = [0, 16], sizes = [64, 240], strides = [1, 1]} : vector<64x256xbf16> to vector<64x240xbf16>
    %475 = vector.extract_strided_slice %413 {offsets = [0, 0], sizes = [64, 16], strides = [1, 1]} : vector<64x256xbf16> to vector<64x16xbf16>
    %476 = tpu.concatenate %474, %475 in 1 : vector<64x240xbf16>, vector<64x16xbf16> -> vector<64x256xbf16>
    %c7_164 = arith.constant 7 : index
    %c0_165 = arith.constant 0 : index
    %477 = vector.load %arg9[%c7_164, %c0_165] : memref<9x256xf32, #tpu.memory_space<vmem>>, vector<1x256xf32>
    %478 = arith.extf %476 : vector<64x256xbf16> to vector<64x256xf32>
    %479 = vector.broadcast %477 : vector<1x256xf32> to vector<64x256xf32>
    %480 = arith.mulf %478, %479 : vector<64x256xf32>
    %481 = arith.truncf %480 : vector<64x256xf32> to vector<64x256xbf16>
    %c448 = arith.constant 448 : index
    %c0_166 = arith.constant 0 : index
    %482 = vector.load %arg12[%c448, %c0_166] : memref<576x256xbf16, #tpu.memory_space<vmem>>, vector<64x256xbf16>
    tpu.vector_store %arg12[%c448, %c0_166], %481 {strides = array<i32>} : memref<576x256xbf16, #tpu.memory_space<vmem>>, vector<64x256xbf16>,
    %483 = vector.extract_strided_slice %413 {offsets = [0, 17], sizes = [64, 239], strides = [1, 1]} : vector<64x256xbf16> to vector<64x239xbf16>
    %484 = vector.extract_strided_slice %413 {offsets = [0, 0], sizes = [64, 17], strides = [1, 1]} : vector<64x256xbf16> to vector<64x17xbf16>
    %485 = tpu.concatenate %483, %484 in 1 : vector<64x239xbf16>, vector<64x17xbf16> -> vector<64x256xbf16>
    %c8_167 = arith.constant 8 : index
    %c0_168 = arith.constant 0 : index
    %486 = vector.load %arg9[%c8_167, %c0_168] : memref<9x256xf32, #tpu.memory_space<vmem>>, vector<1x256xf32>
    %487 = arith.extf %485 : vector<64x256xbf16> to vector<64x256xf32>
    %488 = vector.broadcast %486 : vector<1x256xf32> to vector<64x256xf32>
    %489 = arith.mulf %487, %488 : vector<64x256xf32>
    %490 = arith.truncf %489 : vector<64x256xf32> to vector<64x256xbf16>
    %c512 = arith.constant 512 : index
    %c0_169 = arith.constant 0 : index
    %491 = vector.load %arg12[%c512, %c0_169] : memref<576x256xbf16, #tpu.memory_space<vmem>>, vector<64x256xbf16>
    tpu.vector_store %arg12[%c512, %c0_169], %490 {strides = array<i32>} : memref<576x256xbf16, #tpu.memory_space<vmem>>, vector<64x256xbf16>,
    %c0_170 = arith.constant 0 : index
    %c0_171 = arith.constant 0 : index
    %492 = vector.load %arg6[%c0_170, %c0_171] : memref<32x576xbf16, #tpu.memory_space<vmem>>, vector<32x576xbf16>
    %c0_172 = arith.constant 0 : index
    %c0_173 = arith.constant 0 : index
    %493 = vector.load %arg12[%c0_172, %c0_173] : memref<576x256xbf16, #tpu.memory_space<vmem>>, vector<576x256xbf16>
    %cst_174 = arith.constant dense<0.000000e+00> : vector<32x256xf32>
    %494 = tpu.matmul %492, %493, %cst_174 {dimension_numbers = #tpu.dot_dimension_numbers<[1], [0], [0], [1], [0, 0, 1, 1], [], []>} : vector<32x576xbf16>, vector<576x256xbf16>, vector<32x256xf32> -> vector<32x256xf32>
    %c0_175 = arith.constant 0 : index
    %c0_176 = arith.constant 0 : index
    %495 = vector.load %arg7[%c0_175, %c0_176] : memref<32x1xf32, #tpu.memory_space<vmem>>, vector<32x1xf32>
    %496 = vector.broadcast %495 : vector<32x1xf32> to vector<32x256xf32>
    %497 = arith.addf %494, %496 : vector<32x256xf32>
    %c0_177 = arith.constant 0 : index
    %c0_178 = arith.constant 0 : index
    %c0_179 = arith.constant 0 : index
    %498 = vector.load %arg10[%c0_177, %c0_178, %c0_179] : memref<1x32x256xf32, #tpu.memory_space<vmem>>, vector<1x32x256xf32>
    %499 = vector.shape_cast %498 : vector<1x32x256xf32> to vector<32x256xf32>
    %500 = vector.shape_cast %497 : vector<32x256xf32> to vector<1x32x256xf32>
    tpu.vector_store %arg10[%c0_177, %c0_178, %c0_179], %500 {strides = array<i32>} : memref<1x32x256xf32, #tpu.memory_space<vmem>>, vector<1x32x256xf32>,
    return
  }
  func.func @transform_0(%arg0: i32) -> (i32, i32, i32) {
    %c0_i32 = arith.constant 0 : i32
    %c0_i32_0 = arith.constant 0 : i32
    %c0_i32_1 = arith.constant 0 : i32
    return %arg0, %c0_i32, %c0_i32_0 : i32, i32, i32
  }
  func.func @transform_1(%arg0: i32) -> (i32, i32, i32) {
    %c0_i32 = arith.constant 0 : i32
    %c0_i32_0 = arith.constant 0 : i32
    %c0_i32_1 = arith.constant 0 : i32
    return %arg0, %c0_i32, %c0_i32_0 : i32, i32, i32
  }
  func.func @transform_2(%arg0: i32) -> (i32, i32) {
    %c0_i32 = arith.constant 0 : i32
    %c0_i32_0 = arith.constant 0 : i32
    %c0_i32_1 = arith.constant 0 : i32
    return %c0_i32, %c0_i32_0 : i32, i32
  }
  func.func @transform_3(%arg0: i32) -> (i32, i32) {
    %c0_i32 = arith.constant 0 : i32
    %c0_i32_0 = arith.constant 0 : i32
    %c0_i32_1 = arith.constant 0 : i32
    return %c0_i32, %c0_i32_0 : i32, i32
  }
  func.func @transform_4(%arg0: i32) -> (i32, i32) {
    %c0_i32 = arith.constant 0 : i32
    %c0_i32_0 = arith.constant 0 : i32
    %c0_i32_1 = arith.constant 0 : i32
    return %c0_i32, %c0_i32_0 : i32, i32
  }
  func.func @transform_5(%arg0: i32) -> (i32, i32) {
    %c0_i32 = arith.constant 0 : i32
    %c0_i32_0 = arith.constant 0 : i32
    %c0_i32_1 = arith.constant 0 : i32
    return %c0_i32, %c0_i32_0 : i32, i32
  }
  func.func @transform_6(%arg0: i32) -> (i32, i32) {
    %c0_i32 = arith.constant 0 : i32
    %c0_i32_0 = arith.constant 0 : i32
    %c0_i32_1 = arith.constant 0 : i32
    return %c0_i32, %c0_i32_0 : i32, i32
  }
  func.func @transform_7(%arg0: i32) -> (i32, i32) {
    %c0_i32 = arith.constant 0 : i32
    %c0_i32_0 = arith.constant 0 : i32
    %c0_i32_1 = arith.constant 0 : i32
    return %c0_i32, %c0_i32_0 : i32, i32
  }
  func.func @transform_8(%arg0: i32) -> (i32, i32) {
    %c0_i32 = arith.constant 0 : i32
    %c0_i32_0 = arith.constant 0 : i32
    %c0_i32_1 = arith.constant 0 : i32
    return %c0_i32, %c0_i32_0 : i32, i32
  }
  func.func @transform_9(%arg0: i32) -> (i32, i32, i32) {
    %c0_i32 = arith.constant 0 : i32
    %c0_i32_0 = arith.constant 0 : i32
    %c0_i32_1 = arith.constant 0 : i32
    return %arg0, %c0_i32, %c0_i32_0 : i32, i32, i32
  }
}

</mosaic_0001>

<llo_original>
// kernel: tpu_custom_call.1
$region0: #{tpu_custom_call.1}
  #allocation0 [shape = 'u32[]', space=smem, size = 0x4, offset = 0x4, fixed_abs, tag = 'smem constant byte address 0x4 - core index']
  #allocation1 [shape = 'u32[72,128]{1,0:T(1,128)}', space=vmem, size = 0x9000, scoped, tag = 'internal scratch']
  %s0 = inlined_call_operand.hbm [shape: f32[8,128], index: 0, kind: input, shape index: {}]
  %s1 = inlined_call_operand.hbm [shape: f32[8,128], index: 1, kind: output, shape index: {}]
  %s2 = sld [smem:[#allocation0]]
  $region18: #{tpu_custom_call.1} parent=0
    _
  %s4 = ssub.s32 1, %s2
  %s5 = scalar_select 0, %s4, %s2
  $region1: #{tpu_custom_call.1} parent=0
    #allocation2 [shape = 'u8[4096]{0}', space=vmem, size = 0x1000, scoped, tag = 'input window, operand 0, single buffered']
    #allocation3 [shape = 's32[1]{0}', space=sflag, size = 0x4, scoped, tag = 'scoped memory for tpu_custom_call.1']
    #allocation4 [shape = 's32[1]{0}', space=sflag, size = 0x4, scoped, tag = 'scoped memory for tpu_custom_call.1']
    #allocation5 [shape = 'u8[4096]{0}', space=vmem, size = 0x1000, scoped, tag = 'output window, operand 0, single buffered']
    %6 = vsyncpa [#allocation3], 0
    %7 = vsyncpa [#allocation4], 0
    // Predicated region
    $region2: #{tpu_custom_call.1} parent=1 // pred_check
      _
    $region3: #{tpu_custom_call.1} parent=1 // pred_check_branch
      %9 = sbr.rel (0) target = $region5
    $region4: #{tpu_custom_call.1} parent=1 // pred_region
      %11 = vsyncadd [#allocation3], 0
      %s13 = sshll.u32 %s0, 4
      %s14 = int_to_ptr.hbm [resolvable:$true] %s13
      %s15 = sshll.u32 [#allocation2], 4
      %s16 = int_to_ptr.vmem [resolvable:$true] %s15
      %18 = dma.hbm_to_vmem [thread:$0]  %s14, 128, %s16, [#allocation3]
    $region5: #{tpu_custom_call.1} parent=1 // pred_fallthru
      _
    // Predicated region
    $region6: #{tpu_custom_call.1} parent=1 // pred_check
      _
    $region7: #{tpu_custom_call.1} parent=1 // pred_check_branch
      %20 = sbr.rel (0) target = $region9
    $region8: #{tpu_custom_call.1} parent=1 // pred_region
      %22 = dma.done [#allocation3], 128
    $region9: #{tpu_custom_call.1} parent=1 // pred_fallthru
      _
    %v23 = vld [vmem:[#allocation2] sm:$0xff]
    %24 = vrot.lane.b32.xlu0 %v23, 1
    %v25 = vpop.permute.xlu0 %24
    %26 = vst [vmem:[#allocation5] sm:$0xff] %v25
    // Predicated region
    $region10: #{tpu_custom_call.1} parent=1 // pred_check
      _
    $region11: #{tpu_custom_call.1} parent=1 // pred_check_branch
      %28 = sbr.rel (0) target = $region13
    $region12: #{tpu_custom_call.1} parent=1 // pred_region
      %30 = vsyncadd [#allocation4], 0
      %s32 = sshll.u32 [#allocation5], 4
      %s33 = int_to_ptr.vmem [resolvable:$true] %s32
      %s34 = sshll.u32 %s1, 4
      %s35 = int_to_ptr.hbm [resolvable:$true] %s34
      %37 = dma.vmem_to_hbm [thread:$0]  %s33, 128, %s35, [#allocation4]
    $region13: #{tpu_custom_call.1} parent=1 // pred_fallthru
      _
    // Predicated region
    $region14: #{tpu_custom_call.1} parent=1 // pred_check
      _
    $region15: #{tpu_custom_call.1} parent=1 // pred_check_branch
      %39 = sbr.rel (0) target = $region17
    $region16: #{tpu_custom_call.1} parent=1 // pred_region
      %41 = dma.done [#allocation4], 128
    $region17: #{tpu_custom_call.1} parent=1 // pred_fallthru
      _
    %42 = vsyncpa [#allocation3], 1
    %43 = vsyncpa [#allocation4], 1

</llo_original>
